<compile_context>
chip_gen: v7x
topology: tpu7x:2x2x1
jax: 0.10.0
libtpu: 0.0.40
codegen_flags: <defaults>
</compile_context>

<pallas_src>
import functools

import jax
import jax.numpy as jnp
from jax.experimental import pallas as pl
from jax.experimental.pallas import tpu as pltpu

INPUT_DIM = 768      # fixed by the module (self.input_dim = 768)
HIDDEN_DIM = 512     # Linear(768, 512)
LABEL_PAD = 128      # num_tags zero-padded up to one lane-dense vreg width


def _round_up(n, m):
    return ((n + m - 1) // m) * m


def _mlp_head_kernel(x_ref, w1_ref, b1_ref, w2_ref, b2_ref, o_ref):
    """Fused Linear -> ReLU -> Linear for one tile of token rows.

    x_ref : (tm, 768)        f32 token tile (cast to bf16 in-kernel)
    w1_ref: (768, 512)       bf16 first linear weight (resident)
    b1_ref: (1, 512)         f32 first linear bias
    w2_ref: (512, LABEL_PAD) bf16 second linear weight (zero-padded columns)
    b2_ref: (1, LABEL_PAD)   f32 second linear bias (zero-padded)
    o_ref : (tm, LABEL_PAD)  f32 padded logits tile
    """
    # Cast activations to bf16 on the VPU; MXU matmuls accumulate in f32.
    x = x_ref[...].astype(jnp.bfloat16)

    # Linear(768 -> 512) + bias + ReLU
    h = jnp.dot(x, w1_ref[...], preferred_element_type=jnp.float32)
    h = jnp.maximum(h + b1_ref[...], 0.0).astype(jnp.bfloat16)

    # Linear(512 -> num_tags), lane-padded to 128 for a lane-dense store.
    logits = jnp.dot(h, w2_ref[...], preferred_element_type=jnp.float32)
    o_ref[...] = (logits + b2_ref[...]).astype(o_ref.dtype)


@functools.partial(jax.jit, static_argnames=("tm",))
def propaganda_detection_head(sequence_output, w1, b1, w2p, b2p, *, tm=1024):
    """Equivalent of:
         x = sequence_output.view(-1, 768)
         logits = Linear(768,512) -> ReLU -> Linear(512, num_tags) applied to x

    Returns lane-padded logits of shape (B*S, 128); lanes >= num_tags are
    zero-weight padding (consumers slice / mask them lazily).
    """
    B, S, H = sequence_output.shape
    assert H == INPUT_DIM
    assert tm % 8 == 0, "row tile must be a multiple of the 8-sublane tile"

    N = B * S
    x = sequence_output.reshape(N, H)          # contiguous -> free reshape, no copy

    # Clamp the row tile so a block never exceeds the (8-rounded) row count;
    # a partial last block (N % tm_eff != 0) is handled by Pallas boundary
    # masking, so no explicit zero-padding pass over x is needed.
    tm_eff = min(tm, _round_up(N, 8))
    n_blocks = pl.cdiv(N, tm_eff)

    # bf16 weights (tiny, one-time cast), f32 biases.
    w1b = w1.astype(jnp.bfloat16)
    w2b = w2p.astype(jnp.bfloat16)
    b1f = b1.astype(jnp.float32)
    b2f = b2p.astype(jnp.float32)

    x_bytes = jnp.dtype(x.dtype).itemsize

    # Explicit VMEM budget: double-buffered x/out tiles + resident weights
    # (budgeted x2 for the pipeline's buffer pair) + in-kernel intermediates
    # + headroom.  Stays well under v7x's 64 MiB physical VMEM for tm <= 2048.
    weight_bytes = ((INPUT_DIM * HIDDEN_DIM + HIDDEN_DIM * LABEL_PAD) * 2
                    + (HIDDEN_DIM + LABEL_PAD) * 4)
    tile_bytes = tm_eff * (INPUT_DIM * x_bytes + LABEL_PAD * 4)
    interm_bytes = tm_eff * (INPUT_DIM * 2 + HIDDEN_DIM * (4 + 2) + LABEL_PAD * 4)
    vmem_limit = min(64 * 1024 * 1024,
                     2 * tile_bytes + 2 * weight_bytes + interm_bytes + (8 << 20))

    flops = 2 * N * (INPUT_DIM * HIDDEN_DIM + HIDDEN_DIM * LABEL_PAD)
    bytes_accessed = (N * INPUT_DIM * x_bytes      # x (native dtype, read once)
                      + N * LABEL_PAD * 4          # logits (f32)
                      + weight_bytes)

    out = pl.pallas_call(
        _mlp_head_kernel,
        out_shape=jax.ShapeDtypeStruct((N, LABEL_PAD), jnp.float32),
        grid_spec=pltpu.PrefetchScalarGridSpec(
            num_scalar_prefetch=0,
            grid=(n_blocks,),
            in_specs=[
                pl.BlockSpec((tm_eff, INPUT_DIM), lambda i: (i, 0)),          # x tile
                pl.BlockSpec((INPUT_DIM, HIDDEN_DIM), lambda i: (0, 0)),      # W1 (resident)
                pl.BlockSpec((1, HIDDEN_DIM), lambda i: (0, 0)),              # b1
                pl.BlockSpec((HIDDEN_DIM, LABEL_PAD), lambda i: (0, 0)),      # W2 (padded)
                pl.BlockSpec((1, LABEL_PAD), lambda i: (0, 0)),               # b2 (padded)
            ],
            out_specs=pl.BlockSpec((tm_eff, LABEL_PAD), lambda i: (i, 0)),
        ),
        compiler_params=pltpu.CompilerParams(
            dimension_semantics=("parallel",),   # megacore-shardable on v7x
            vmem_limit_bytes=vmem_limit,
        ),
        cost_estimate=pl.CostEstimate(
            flops=flops, transcendentals=0, bytes_accessed=bytes_accessed),
    )(x, w1b, b1f, w2b, b2f)

    return out


def init_head_params(key, num_tags):
    """Deterministic synthetic parameters matching nn.Linear shapes
    (weights stored transposed: [in_features, out_features])."""
    k1, k2, k3, k4 = jax.random.split(key, 4)
    s1 = 1.0 / jnp.sqrt(jnp.float32(INPUT_DIM))
    s2 = 1.0 / jnp.sqrt(jnp.float32(HIDDEN_DIM))
    w1 = jax.random.uniform(k1, (INPUT_DIM, HIDDEN_DIM), jnp.float32, -s1, s1)
    b1 = jax.random.uniform(k2, (1, HIDDEN_DIM), jnp.float32, -s1, s1)
    w2 = jax.random.uniform(k3, (HIDDEN_DIM, num_tags), jnp.float32, -s2, s2)
    b2 = jax.random.uniform(k4, (1, num_tags), jnp.float32, -s2, s2)
    # Zero-pad the label dimension up to LABEL_PAD lanes for the kernel.
    w2p = jnp.zeros((HIDDEN_DIM, LABEL_PAD), jnp.float32).at[:, :num_tags].set(w2)
    b2p = jnp.zeros((1, LABEL_PAD), jnp.float32).at[:, :num_tags].set(b2)
    return w1, b1, w2, b2, w2p, b2p


def reference_head(sequence_output, w1, b1, w2, b2):
    """Pure-JAX f32 reference of the PyTorch linear_relu_stack on flattened tokens."""
    N = sequence_output.shape[0] * sequence_output.shape[1]
    x = sequence_output.reshape(N, INPUT_DIM)
    h = jnp.maximum(x @ w1 + b1, 0.0)
    return h @ w2 + b2


def _run_case(key, B, S, num_tags, tm):
    k_x, k_p = jax.random.split(key)
    sequence_output = jax.random.normal(k_x, (B, S, INPUT_DIM), jnp.float32)
    w1, b1, w2, b2, w2p, b2p = init_head_params(k_p, num_tags)

    out_padded = propaganda_detection_head(sequence_output, w1, b1, w2p, b2p, tm=tm)
    out_padded = jax.block_until_ready(out_padded)

    N = B * S
    # Slice only here (outside the jitted head) for the correctness check;
    # real consumers keep the padded, lane-dense layout and mask instead.
    logits = out_padded[:, :num_tags]
    ref = reference_head(sequence_output, w1, b1, w2, b2)

    assert out_padded.shape == (N, LABEL_PAD)
    assert logits.shape == (N, num_tags)
    # bf16 activation/weight rounding (f32 accumulation) -> loose tolerance.
    assert jnp.allclose(logits, ref, atol=5e-2, rtol=5e-2), "mismatch vs reference"


if __name__ == "__main__":
    key = jax.random.PRNGKey(0)
    k0, k1, k2 = jax.random.split(key, 3)

    # Small shapes consistent with the module (hidden pinned to 768, num_tags=15).
    # Case 1: tiny (N=16, single exact block).
    # Case 2: exact multi-block grid (N=256, grid=2, no remainder).
    # Case 3: multi-block grid with a partial boundary block (N=1332, grid=6).
    _run_case(k0, B=2, S=8, num_tags=15, tm=128)
    _run_case(k1, B=2, S=128, num_tags=15, tm=128)
    _run_case(k2, B=4, S=333, num_tags=15, tm=256)

    print("KERNEL_OK")
</pallas_src>

<mosaic_0001>
module attributes {stable_mosaic.version = 11 : i64} {
  func.func @_mlp_head_kernel(%arg0: i32, %arg1: memref<16x768xf32, #tpu.memory_space<vmem>>, %arg2: memref<768x512xbf16, #tpu.memory_space<vmem>>, %arg3: memref<1x512xf32, #tpu.memory_space<vmem>>, %arg4: memref<512x128xbf16, #tpu.memory_space<vmem>>, %arg5: memref<1x128xf32, #tpu.memory_space<vmem>>, %arg6: memref<16x128xf32, #tpu.memory_space<vmem>>) attributes {dimension_semantics = [#tpu.dimension_semantics<parallel>], iteration_bounds = array<i64: 1>, scalar_prefetch = 0 : i64, scratch_operands = 0 : i64, tpu.core_type = #tpu.core_type<tc>, window_params = [{transform_indices = @transform_0, window_bounds = array<i64: 16, 768>}, {pipeline_mode = #tpu.pipeline_mode<synchronous>, transform_indices = @transform_1, window_bounds = array<i64: 768, 512>}, {pipeline_mode = #tpu.pipeline_mode<synchronous>, transform_indices = @transform_2, window_bounds = array<i64: 1, 512>}, {pipeline_mode = #tpu.pipeline_mode<synchronous>, transform_indices = @transform_3, window_bounds = array<i64: 512, 128>}, {pipeline_mode = #tpu.pipeline_mode<synchronous>, transform_indices = @transform_4, window_bounds = array<i64: 1, 128>}, {transform_indices = @transform_5, window_bounds = array<i64: 16, 128>}]} {
    %c0 = arith.constant 0 : index
    %c0_0 = arith.constant 0 : index
    %0 = vector.load %arg1[%c0, %c0_0] : memref<16x768xf32, #tpu.memory_space<vmem>>, vector<16x768xf32>
    %1 = arith.truncf %0 : vector<16x768xf32> to vector<16x768xbf16>
    %c0_1 = arith.constant 0 : index
    %c0_2 = arith.constant 0 : index
    %2 = vector.load %arg2[%c0_1, %c0_2] : memref<768x512xbf16, #tpu.memory_space<vmem>>, vector<768x512xbf16>
    %cst = arith.constant dense<0.000000e+00> : vector<16x512xf32>
    %3 = tpu.matmul %1, %2, %cst {dimension_numbers = #tpu.dot_dimension_numbers<[1], [0], [0], [1], [0, 0, 1, 1], [], []>} : vector<16x768xbf16>, vector<768x512xbf16>, vector<16x512xf32> -> vector<16x512xf32>
    %c0_3 = arith.constant 0 : index
    %c0_4 = arith.constant 0 : index
    %4 = vector.load %arg3[%c0_3, %c0_4] : memref<1x512xf32, #tpu.memory_space<vmem>>, vector<1x512xf32>
    %5 = vector.broadcast %4 : vector<1x512xf32> to vector<16x512xf32>
    %6 = arith.addf %3, %5 : vector<16x512xf32>
    %cst_5 = arith.constant 0.000000e+00 : f32
    %7 = vector.broadcast %cst_5 : f32 to vector<16x512xf32>
    %8 = arith.maximumf %6, %7 : vector<16x512xf32>
    %9 = arith.truncf %8 : vector<16x512xf32> to vector<16x512xbf16>
    %c0_6 = arith.constant 0 : index
    %c0_7 = arith.constant 0 : index
    %10 = vector.load %arg4[%c0_6, %c0_7] : memref<512x128xbf16, #tpu.memory_space<vmem>>, vector<512x128xbf16>
    %cst_8 = arith.constant dense<0.000000e+00> : vector<16x128xf32>
    %11 = tpu.matmul %9, %10, %cst_8 {dimension_numbers = #tpu.dot_dimension_numbers<[1], [0], [0], [1], [0, 0, 1, 1], [], []>} : vector<16x512xbf16>, vector<512x128xbf16>, vector<16x128xf32> -> vector<16x128xf32>
    %c0_9 = arith.constant 0 : index
    %c0_10 = arith.constant 0 : index
    %12 = vector.load %arg5[%c0_9, %c0_10] : memref<1x128xf32, #tpu.memory_space<vmem>>, vector<1x128xf32>
    %13 = vector.broadcast %12 : vector<1x128xf32> to vector<16x128xf32>
    %14 = arith.addf %11, %13 : vector<16x128xf32>
    %c0_11 = arith.constant 0 : index
    %c0_12 = arith.constant 0 : index
    %15 = vector.load %arg6[%c0_11, %c0_12] : memref<16x128xf32, #tpu.memory_space<vmem>>, vector<16x128xf32>
    tpu.vector_store %arg6[%c0_11, %c0_12], %14 {strides = array<i32>} : memref<16x128xf32, #tpu.memory_space<vmem>>, vector<16x128xf32>,
    return
  }
  func.func @transform_0(%arg0: i32) -> (i32, i32) {
    %c0_i32 = arith.constant 0 : i32
    %c0_i32_0 = arith.constant 0 : i32
    return %arg0, %c0_i32 : i32, i32
  }
  func.func @transform_1(%arg0: i32) -> (i32, i32) {
    %c0_i32 = arith.constant 0 : i32
    %c0_i32_0 = arith.constant 0 : i32
    %c0_i32_1 = arith.constant 0 : i32
    return %c0_i32, %c0_i32_0 : i32, i32
  }
  func.func @transform_2(%arg0: i32) -> (i32, i32) {
    %c0_i32 = arith.constant 0 : i32
    %c0_i32_0 = arith.constant 0 : i32
    %c0_i32_1 = arith.constant 0 : i32
    return %c0_i32, %c0_i32_0 : i32, i32
  }
  func.func @transform_3(%arg0: i32) -> (i32, i32) {
    %c0_i32 = arith.constant 0 : i32
    %c0_i32_0 = arith.constant 0 : i32
    %c0_i32_1 = arith.constant 0 : i32
    return %c0_i32, %c0_i32_0 : i32, i32
  }
  func.func @transform_4(%arg0: i32) -> (i32, i32) {
    %c0_i32 = arith.constant 0 : i32
    %c0_i32_0 = arith.constant 0 : i32
    %c0_i32_1 = arith.constant 0 : i32
    return %c0_i32, %c0_i32_0 : i32, i32
  }
  func.func @transform_5(%arg0: i32) -> (i32, i32) {
    %c0_i32 = arith.constant 0 : i32
    %c0_i32_0 = arith.constant 0 : i32
    return %arg0, %c0_i32 : i32, i32
  }
}

</mosaic_0001>

<llo_original>
// kernel: propaganda_detection_head.1
$region0: #{propaganda_detection_head.1}
  #allocation0 [shape = 'u32[]', space=smem, size = 0x4, offset = 0x4, fixed_abs, tag = 'smem constant byte address 0x4 - core index']
  #allocation1 [shape = 'u32[144,128]{1,0:T(1,128)}', space=vmem, size = 0x12000, scoped, tag = 'internal scratch']
  %s0 = inlined_call_operand.vmem [shape: f32[16,768], index: 0, kind: input, shape index: {}]
  %s1 = inlined_call_operand.vmem [shape: bf16[768,512], index: 1, kind: input, shape index: {}]
  %s2 = inlined_call_operand.vmem [shape: f32[1,512], index: 2, kind: input, shape index: {}]
  %s3 = inlined_call_operand.vmem [shape: bf16[512,128], index: 3, kind: input, shape index: {}]
  %s4 = inlined_call_operand.vmem [shape: f32[1,128], index: 4, kind: input, shape index: {}]
  %s5 = inlined_call_operand.hbm [shape: f32[16,128], index: 5, kind: output, shape index: {}]
  %s6 = sld [smem:[#allocation0]]
  $region30: #{propaganda_detection_head.1} parent=0
    _
  %s8 = ssub.s32 1, %s6
  %s9 = scalar_select 0, %s8, %s6
  $region1: #{propaganda_detection_head.1} parent=0
    #allocation2 [shape = 'u8[8192]{0}', space=vmem, size = 0x2000, scoped, tag = 'output window, operand 0, single buffered']
    #allocation3 [shape = 's32[1]{0}', space=sflag, size = 0x4, scoped, tag = 'scoped memory for propaganda_detection_head.1']
    %10 = vsyncpa [#allocation3], 0
    // Predicated region
    $region2: #{propaganda_detection_head.1} parent=1 // pred_check
      _
    $region3: #{propaganda_detection_head.1} parent=1 // pred_check_branch
      %12 = sbr.rel (0) target = $region5
    $region4: #{propaganda_detection_head.1} parent=1 // pred_region
      _
    $region5: #{propaganda_detection_head.1} parent=1 // pred_fallthru
      _
    // Predicated region
    $region6: #{propaganda_detection_head.1} parent=1 // pred_check
      _
    $region7: #{propaganda_detection_head.1} parent=1 // pred_check_branch
      %14 = sbr.rel (0) target = $region9
    $region8: #{propaganda_detection_head.1} parent=1 // pred_region
      _
    $region9: #{propaganda_detection_head.1} parent=1 // pred_fallthru
      _
    // Predicated region
    $region10: #{propaganda_detection_head.1} parent=1 // pred_check
      _
    $region11: #{propaganda_detection_head.1} parent=1 // pred_check_branch
      %16 = sbr.rel (0) target = $region13
    $region12: #{propaganda_detection_head.1} parent=1 // pred_region
      _
    $region13: #{propaganda_detection_head.1} parent=1 // pred_fallthru
      _
    // Predicated region
    $region14: #{propaganda_detection_head.1} parent=1 // pred_check
      _
    $region15: #{propaganda_detection_head.1} parent=1 // pred_check_branch
      %18 = sbr.rel (0) target = $region17
    $region16: #{propaganda_detection_head.1} parent=1 // pred_region
      _
    $region17: #{propaganda_detection_head.1} parent=1 // pred_fallthru
      _
    // Predicated region
    $region18: #{propaganda_detection_head.1} parent=1 // pred_check
      _
    $region19: #{propaganda_detection_head.1} parent=1 // pred_check_branch
      %20 = sbr.rel (0) target = $region21
    $region20: #{propaganda_detection_head.1} parent=1 // pred_region
      _
    $region21: #{propaganda_detection_head.1} parent=1 // pred_fallthru
      _
    %v22 = vld [vmem:[%s0] sm:$0xff]
    %v23 = vld [vmem:[%s0 + $0x8] sm:$0xff]
    %v24 = vld [vmem:[%s0 + $0x10] sm:$0xff]
    %v25 = vld [vmem:[%s0 + $0x18] sm:$0xff]
    %v26 = vld [vmem:[%s0 + $0x20] sm:$0xff]
    %v27 = vld [vmem:[%s0 + $0x28] sm:$0xff]
    %v28 = vld [vmem:[%s0 + $0x30] sm:$0xff]
    %v29 = vld [vmem:[%s0 + $0x38] sm:$0xff]
    %v30 = vld [vmem:[%s0 + $0x40] sm:$0xff]
    %v31 = vld [vmem:[%s0 + $0x48] sm:$0xff]
    %v32 = vld [vmem:[%s0 + $0x50] sm:$0xff]
    %v33 = vld [vmem:[%s0 + $0x58] sm:$0xff]
    %v34 = vpack.c.bf16 %v28, %v22
    %v35 = vpack.c.bf16 %v29, %v23
    %v36 = vpack.c.bf16 %v30, %v24
    %v37 = vpack.c.bf16 %v31, %v25
    %v38 = vpack.c.bf16 %v32, %v26
    %v39 = vpack.c.bf16 %v33, %v27
    %v40 = vld [vmem:[%s1] sm:$0xff]
    %v41 = vld [vmem:[%s1 + $0x8] sm:$0xff]
    %v42 = vld [vmem:[%s1 + $0x10] sm:$0xff]
    %v43 = vld [vmem:[%s1 + $0x18] sm:$0xff]
    %v44 = vld [vmem:[%s1 + $0x20] sm:$0xff]
    %v45 = vld [vmem:[%s1 + $0x28] sm:$0xff]
    %v46 = vld [vmem:[%s1 + $0x30] sm:$0xff]
    %v47 = vld [vmem:[%s1 + $0x38] sm:$0xff]
    %v48 = vld [vmem:[%s1 + $0x40] sm:$0xff]
    %v49 = vld [vmem:[%s1 + $0x48] sm:$0xff]
    %v50 = vld [vmem:[%s1 + $0x50] sm:$0xff]
    %v51 = vld [vmem:[%s1 + $0x58] sm:$0xff]
    %v52 = vld [vmem:[%s1 + $0x60] sm:$0xff]
    %v53 = vld [vmem:[%s1 + $0x68] sm:$0xff]
    %v54 = vld [vmem:[%s1 + $0x70] sm:$0xff]
    %v55 = vld [vmem:[%s1 + $0x78] sm:$0xff]
    %v56 = vld [vmem:[%s1 + $0x80] sm:$0xff]
    %v57 = vld [vmem:[%s1 + $0x88] sm:$0xff]
    %v58 = vld [vmem:[%s1 + $0x90] sm:$0xff]
    %v59 = vld [vmem:[%s1 + $0x98] sm:$0xff]
    %v60 = vld [vmem:[%s1 + $0xa0] sm:$0xff]
    %v61 = vld [vmem:[%s1 + $0xa8] sm:$0xff]
    %v62 = vld [vmem:[%s1 + $0xb0] sm:$0xff]
    %v63 = vld [vmem:[%s1 + $0xb8] sm:$0xff]
    %v64 = vld [vmem:[%s1 + $0xc0] sm:$0xff]
    %v65 = vld [vmem:[%s1 + $0xc8] sm:$0xff]
    %v66 = vld [vmem:[%s1 + $0xd0] sm:$0xff]
    %v67 = vld [vmem:[%s1 + $0xd8] sm:$0xff]
    %v68 = vld [vmem:[%s1 + $0xe0] sm:$0xff]
    %v69 = vld [vmem:[%s1 + $0xe8] sm:$0xff]
    %v70 = vld [vmem:[%s1 + $0xf0] sm:$0xff]
    %v71 = vld [vmem:[%s1 + $0xf8] sm:$0xff]
    %v72 = vld [vmem:[%s1 + $0x100] sm:$0xff]
    %v73 = vld [vmem:[%s1 + $0x108] sm:$0xff]
    %v74 = vld [vmem:[%s1 + $0x110] sm:$0xff]
    %v75 = vld [vmem:[%s1 + $0x118] sm:$0xff]
    %v76 = vld [vmem:[%s1 + $0x120] sm:$0xff]
    %v77 = vld [vmem:[%s1 + $0x128] sm:$0xff]
    %v78 = vld [vmem:[%s1 + $0x130] sm:$0xff]
    %v79 = vld [vmem:[%s1 + $0x138] sm:$0xff]
    %v80 = vld [vmem:[%s1 + $0x140] sm:$0xff]
    %v81 = vld [vmem:[%s1 + $0x148] sm:$0xff]
    %v82 = vld [vmem:[%s1 + $0x150] sm:$0xff]
    %v83 = vld [vmem:[%s1 + $0x158] sm:$0xff]
    %v84 = vld [vmem:[%s1 + $0x160] sm:$0xff]
    %v85 = vld [vmem:[%s1 + $0x168] sm:$0xff]
    %v86 = vld [vmem:[%s1 + $0x170] sm:$0xff]
    %v87 = vld [vmem:[%s1 + $0x178] sm:$0xff]
    %v88 = vld [vmem:[%s1 + $0x180] sm:$0xff]
    %v89 = vld [vmem:[%s1 + $0x188] sm:$0xff]
    %v90 = vld [vmem:[%s1 + $0x190] sm:$0xff]
    %v91 = vld [vmem:[%s1 + $0x198] sm:$0xff]
    %v92 = vld [vmem:[%s1 + $0x1a0] sm:$0xff]
    %v93 = vld [vmem:[%s1 + $0x1a8] sm:$0xff]
    %v94 = vld [vmem:[%s1 + $0x1b0] sm:$0xff]
    %v95 = vld [vmem:[%s1 + $0x1b8] sm:$0xff]
    %v96 = vld [vmem:[%s1 + $0x1c0] sm:$0xff]
    %v97 = vld [vmem:[%s1 + $0x1c8] sm:$0xff]
    %v98 = vld [vmem:[%s1 + $0x1d0] sm:$0xff]
    %v99 = vld [vmem:[%s1 + $0x1d8] sm:$0xff]
    %v100 = vld [vmem:[%s1 + $0x1e0] sm:$0xff]
    %v101 = vld [vmem:[%s1 + $0x1e8] sm:$0xff]
    %v102 = vld [vmem:[%s1 + $0x1f0] sm:$0xff]
    %v103 = vld [vmem:[%s1 + $0x1f8] sm:$0xff]
    %v104 = vld [vmem:[%s1 + $0x200] sm:$0xff]
    %v105 = vld [vmem:[%s1 + $0x208] sm:$0xff]
    %v106 = vld [vmem:[%s1 + $0x210] sm:$0xff]
    %v107 = vld [vmem:[%s1 + $0x218] sm:$0xff]
    %v108 = vld [vmem:[%s1 + $0x220] sm:$0xff]
    %v109 = vld [vmem:[%s1 + $0x228] sm:$0xff]
    %v110 = vld [vmem:[%s1 + $0x230] sm:$0xff]
    %v111 = vld [vmem:[%s1 + $0x238] sm:$0xff]
    %v112 = vld [vmem:[%s1 + $0x240] sm:$0xff]
    %v113 = vld [vmem:[%s1 + $0x248] sm:$0xff]
    %v114 = vld [vmem:[%s1 + $0x250] sm:$0xff]
    %v115 = vld [vmem:[%s1 + $0x258] sm:$0xff]
    %v116 = vld [vmem:[%s1 + $0x260] sm:$0xff]
    %v117 = vld [vmem:[%s1 + $0x268] sm:$0xff]
    %v118 = vld [vmem:[%s1 + $0x270] sm:$0xff]
    %v119 = vld [vmem:[%s1 + $0x278] sm:$0xff]
    %v120 = vld [vmem:[%s1 + $0x280] sm:$0xff]
    %v121 = vld [vmem:[%s1 + $0x288] sm:$0xff]
    %v122 = vld [vmem:[%s1 + $0x290] sm:$0xff]
    %v123 = vld [vmem:[%s1 + $0x298] sm:$0xff]
    %v124 = vld [vmem:[%s1 + $0x2a0] sm:$0xff]
    %v125 = vld [vmem:[%s1 + $0x2a8] sm:$0xff]
    %v126 = vld [vmem:[%s1 + $0x2b0] sm:$0xff]
    %v127 = vld [vmem:[%s1 + $0x2b8] sm:$0xff]
    %v128 = vld [vmem:[%s1 + $0x2c0] sm:$0xff]
    %v129 = vld [vmem:[%s1 + $0x2c8] sm:$0xff]
    %v130 = vld [vmem:[%s1 + $0x2d0] sm:$0xff]
    %v131 = vld [vmem:[%s1 + $0x2d8] sm:$0xff]
    %v132 = vld [vmem:[%s1 + $0x2e0] sm:$0xff]
    %v133 = vld [vmem:[%s1 + $0x2e8] sm:$0xff]
    %v134 = vld [vmem:[%s1 + $0x2f0] sm:$0xff]
    %v135 = vld [vmem:[%s1 + $0x2f8] sm:$0xff]
    %v136 = vld [vmem:[%s1 + $0x300] sm:$0xff]
    %v137 = vld [vmem:[%s1 + $0x308] sm:$0xff]
    %v138 = vld [vmem:[%s1 + $0x310] sm:$0xff]
    %v139 = vld [vmem:[%s1 + $0x318] sm:$0xff]
    %v140 = vld [vmem:[%s1 + $0x320] sm:$0xff]
    %v141 = vld [vmem:[%s1 + $0x328] sm:$0xff]
    %v142 = vld [vmem:[%s1 + $0x330] sm:$0xff]
    %v143 = vld [vmem:[%s1 + $0x338] sm:$0xff]
    %v144 = vld [vmem:[%s1 + $0x340] sm:$0xff]
    %v145 = vld [vmem:[%s1 + $0x348] sm:$0xff]
    %v146 = vld [vmem:[%s1 + $0x350] sm:$0xff]
    %v147 = vld [vmem:[%s1 + $0x358] sm:$0xff]
    %v148 = vld [vmem:[%s1 + $0x360] sm:$0xff]
    %v149 = vld [vmem:[%s1 + $0x368] sm:$0xff]
    %v150 = vld [vmem:[%s1 + $0x370] sm:$0xff]
    %v151 = vld [vmem:[%s1 + $0x378] sm:$0xff]
    %v152 = vld [vmem:[%s1 + $0x380] sm:$0xff]
    %v153 = vld [vmem:[%s1 + $0x388] sm:$0xff]
    %v154 = vld [vmem:[%s1 + $0x390] sm:$0xff]
    %v155 = vld [vmem:[%s1 + $0x398] sm:$0xff]
    %v156 = vld [vmem:[%s1 + $0x3a0] sm:$0xff]
    %v157 = vld [vmem:[%s1 + $0x3a8] sm:$0xff]
    %v158 = vld [vmem:[%s1 + $0x3b0] sm:$0xff]
    %v159 = vld [vmem:[%s1 + $0x3b8] sm:$0xff]
    %v160 = vld [vmem:[%s1 + $0x3c0] sm:$0xff]
    %v161 = vld [vmem:[%s1 + $0x3c8] sm:$0xff]
    %v162 = vld [vmem:[%s1 + $0x3d0] sm:$0xff]
    %v163 = vld [vmem:[%s1 + $0x3d8] sm:$0xff]
    %v164 = vld [vmem:[%s1 + $0x3e0] sm:$0xff]
    %v165 = vld [vmem:[%s1 + $0x3e8] sm:$0xff]
    %v166 = vld [vmem:[%s1 + $0x3f0] sm:$0xff]
    %v167 = vld [vmem:[%s1 + $0x3f8] sm:$0xff]
    %v168 = vld [vmem:[%s1 + $0x400] sm:$0xff]
    %v169 = vld [vmem:[%s1 + $0x408] sm:$0xff]
    %v170 = vld [vmem:[%s1 + $0x410] sm:$0xff]
    %v171 = vld [vmem:[%s1 + $0x418] sm:$0xff]
    %v172 = vld [vmem:[%s1 + $0x420] sm:$0xff]
    %v173 = vld [vmem:[%s1 + $0x428] sm:$0xff]
    %v174 = vld [vmem:[%s1 + $0x430] sm:$0xff]
    %v175 = vld [vmem:[%s1 + $0x438] sm:$0xff]
    %v176 = vld [vmem:[%s1 + $0x440] sm:$0xff]
    %v177 = vld [vmem:[%s1 + $0x448] sm:$0xff]
    %v178 = vld [vmem:[%s1 + $0x450] sm:$0xff]
    %v179 = vld [vmem:[%s1 + $0x458] sm:$0xff]
    %v180 = vld [vmem:[%s1 + $0x460] sm:$0xff]
    %v181 = vld [vmem:[%s1 + $0x468] sm:$0xff]
    %v182 = vld [vmem:[%s1 + $0x470] sm:$0xff]
    %v183 = vld [vmem:[%s1 + $0x478] sm:$0xff]
    %v184 = vld [vmem:[%s1 + $0x480] sm:$0xff]
    %v185 = vld [vmem:[%s1 + $0x488] sm:$0xff]
    %v186 = vld [vmem:[%s1 + $0x490] sm:$0xff]
    %v187 = vld [vmem:[%s1 + $0x498] sm:$0xff]
    %v188 = vld [vmem:[%s1 + $0x4a0] sm:$0xff]
    %v189 = vld [vmem:[%s1 + $0x4a8] sm:$0xff]
    %v190 = vld [vmem:[%s1 + $0x4b0] sm:$0xff]
    %v191 = vld [vmem:[%s1 + $0x4b8] sm:$0xff]
    %v192 = vld [vmem:[%s1 + $0x4c0] sm:$0xff]
    %v193 = vld [vmem:[%s1 + $0x4c8] sm:$0xff]
    %v194 = vld [vmem:[%s1 + $0x4d0] sm:$0xff]
    %v195 = vld [vmem:[%s1 + $0x4d8] sm:$0xff]
    %v196 = vld [vmem:[%s1 + $0x4e0] sm:$0xff]
    %v197 = vld [vmem:[%s1 + $0x4e8] sm:$0xff]
    %v198 = vld [vmem:[%s1 + $0x4f0] sm:$0xff]
    %v199 = vld [vmem:[%s1 + $0x4f8] sm:$0xff]
    %v200 = vld [vmem:[%s1 + $0x500] sm:$0xff]
    %v201 = vld [vmem:[%s1 + $0x508] sm:$0xff]
    %v202 = vld [vmem:[%s1 + $0x510] sm:$0xff]
    %v203 = vld [vmem:[%s1 + $0x518] sm:$0xff]
    %v204 = vld [vmem:[%s1 + $0x520] sm:$0xff]
    %v205 = vld [vmem:[%s1 + $0x528] sm:$0xff]
    %v206 = vld [vmem:[%s1 + $0x530] sm:$0xff]
    %v207 = vld [vmem:[%s1 + $0x538] sm:$0xff]
    %v208 = vld [vmem:[%s1 + $0x540] sm:$0xff]
    %v209 = vld [vmem:[%s1 + $0x548] sm:$0xff]
    %v210 = vld [vmem:[%s1 + $0x550] sm:$0xff]
    %v211 = vld [vmem:[%s1 + $0x558] sm:$0xff]
    %v212 = vld [vmem:[%s1 + $0x560] sm:$0xff]
    %v213 = vld [vmem:[%s1 + $0x568] sm:$0xff]
    %v214 = vld [vmem:[%s1 + $0x570] sm:$0xff]
    %v215 = vld [vmem:[%s1 + $0x578] sm:$0xff]
    %v216 = vld [vmem:[%s1 + $0x580] sm:$0xff]
    %v217 = vld [vmem:[%s1 + $0x588] sm:$0xff]
    %v218 = vld [vmem:[%s1 + $0x590] sm:$0xff]
    %v219 = vld [vmem:[%s1 + $0x598] sm:$0xff]
    %v220 = vld [vmem:[%s1 + $0x5a0] sm:$0xff]
    %v221 = vld [vmem:[%s1 + $0x5a8] sm:$0xff]
    %v222 = vld [vmem:[%s1 + $0x5b0] sm:$0xff]
    %v223 = vld [vmem:[%s1 + $0x5b8] sm:$0xff]
    %v224 = vld [vmem:[%s1 + $0x5c0] sm:$0xff]
    %v225 = vld [vmem:[%s1 + $0x5c8] sm:$0xff]
    %v226 = vld [vmem:[%s1 + $0x5d0] sm:$0xff]
    %v227 = vld [vmem:[%s1 + $0x5d8] sm:$0xff]
    %v228 = vld [vmem:[%s1 + $0x5e0] sm:$0xff]
    %v229 = vld [vmem:[%s1 + $0x5e8] sm:$0xff]
    %v230 = vld [vmem:[%s1 + $0x5f0] sm:$0xff]
    %v231 = vld [vmem:[%s1 + $0x5f8] sm:$0xff]
    %v232 = vld [vmem:[%s2] sm:$0xf]
    %v234 = vlaneseq
    %v235 = vshrl.u32 %v234, 7
    %v236 = vsub.s32 0, %v235
    %v237 = vrot.slane %v232, %v236
    %v238 = vlaneseq
    %v239 = vshrl.u32 %v238, 7
    %v240 = vsub.s32 1, %v239
    %v241 = vrot.slane %v232, %v240
    %v242 = vlaneseq
    %v243 = vshrl.u32 %v242, 7
    %v244 = vsub.s32 2, %v243
    %v245 = vrot.slane %v232, %v244
    %v246 = vlaneseq
    %v247 = vshrl.u32 %v246, 7
    %v248 = vsub.s32 3, %v247
    %v249 = vrot.slane %v232, %v248
    %v446 = vunpack.c.l.b16 %v40
    %v447 = vunpack.c.h.b16 %v40
    %v448 = vunpack.c.l.b16 %v41
    %v449 = vunpack.c.h.b16 %v41
    %v450 = vunpack.c.l.b16 %v42
    %v451 = vunpack.c.h.b16 %v42
    %v452 = vunpack.c.l.b16 %v43
    %v453 = vunpack.c.h.b16 %v43
    %v454 = vunpack.c.l.b16 %v44
    %v455 = vunpack.c.h.b16 %v44
    %v456 = vunpack.c.l.b16 %v45
    %v457 = vunpack.c.h.b16 %v45
    %v458 = vunpack.c.l.b16 %v46
    %v459 = vunpack.c.h.b16 %v46
    %v460 = vunpack.c.l.b16 %v47
    %v461 = vunpack.c.h.b16 %v47
    %v462 = vunpack.c.l.b16 %v48
    %v463 = vunpack.c.h.b16 %v48
    %v464 = vunpack.c.l.b16 %v49
    %v465 = vunpack.c.h.b16 %v49
    %v466 = vunpack.c.l.b16 %v50
    %v467 = vunpack.c.h.b16 %v50
    %v468 = vunpack.c.l.b16 %v51
    %v469 = vunpack.c.h.b16 %v51
    %v470 = vunpack.c.l.b16 %v52
    %v471 = vunpack.c.h.b16 %v52
    %v472 = vunpack.c.l.b16 %v53
    %v473 = vunpack.c.h.b16 %v53
    %v474 = vunpack.c.l.b16 %v54
    %v475 = vunpack.c.h.b16 %v54
    %v476 = vunpack.c.l.b16 %v55
    %v477 = vunpack.c.h.b16 %v55
    %v478 = vunpack.c.l.b16 %v56
    %v479 = vunpack.c.h.b16 %v56
    %v480 = vunpack.c.l.b16 %v57
    %v481 = vunpack.c.h.b16 %v57
    %v482 = vunpack.c.l.b16 %v58
    %v483 = vunpack.c.h.b16 %v58
    %v484 = vunpack.c.l.b16 %v59
    %v485 = vunpack.c.h.b16 %v59
    %v486 = vunpack.c.l.b16 %v60
    %v487 = vunpack.c.h.b16 %v60
    %v488 = vunpack.c.l.b16 %v61
    %v489 = vunpack.c.h.b16 %v61
    %v490 = vunpack.c.l.b16 %v62
    %v491 = vunpack.c.h.b16 %v62
    %v492 = vunpack.c.l.b16 %v63
    %v493 = vunpack.c.h.b16 %v63
    %v494 = vunpack.c.l.b16 %v64
    %v495 = vunpack.c.h.b16 %v64
    %v496 = vunpack.c.l.b16 %v65
    %v497 = vunpack.c.h.b16 %v65
    %v498 = vunpack.c.l.b16 %v66
    %v499 = vunpack.c.h.b16 %v66
    %v500 = vunpack.c.l.b16 %v67
    %v501 = vunpack.c.h.b16 %v67
    %v502 = vunpack.c.l.b16 %v68
    %v503 = vunpack.c.h.b16 %v68
    %v504 = vunpack.c.l.b16 %v69
    %v505 = vunpack.c.h.b16 %v69
    %v506 = vunpack.c.l.b16 %v70
    %v507 = vunpack.c.h.b16 %v70
    %v508 = vunpack.c.l.b16 %v71
    %v509 = vunpack.c.h.b16 %v71
    %v510 = vunpack.c.l.b16 %v72
    %v511 = vunpack.c.h.b16 %v72
    %v512 = vunpack.c.l.b16 %v73
    %v513 = vunpack.c.h.b16 %v73
    %v514 = vunpack.c.l.b16 %v74
    %v515 = vunpack.c.h.b16 %v74
    %v516 = vunpack.c.l.b16 %v75
    %v517 = vunpack.c.h.b16 %v75
    %v518 = vunpack.c.l.b16 %v76
    %v519 = vunpack.c.h.b16 %v76
    %v520 = vunpack.c.l.b16 %v77
    %v521 = vunpack.c.h.b16 %v77
    %v522 = vunpack.c.l.b16 %v78
    %v523 = vunpack.c.h.b16 %v78
    %v524 = vunpack.c.l.b16 %v79
    %v525 = vunpack.c.h.b16 %v79
    %v526 = vunpack.c.l.b16 %v80
    %v527 = vunpack.c.h.b16 %v80
    %v528 = vunpack.c.l.b16 %v81
    %v529 = vunpack.c.h.b16 %v81
    %v530 = vunpack.c.l.b16 %v82
    %v531 = vunpack.c.h.b16 %v82
    %v532 = vunpack.c.l.b16 %v83
    %v533 = vunpack.c.h.b16 %v83
    %v534 = vunpack.c.l.b16 %v84
    %v535 = vunpack.c.h.b16 %v84
    %v536 = vunpack.c.l.b16 %v85
    %v537 = vunpack.c.h.b16 %v85
    %v538 = vunpack.c.l.b16 %v86
    %v539 = vunpack.c.h.b16 %v86
    %v540 = vunpack.c.l.b16 %v87
    %v541 = vunpack.c.h.b16 %v87
    %v542 = vunpack.c.l.b16 %v88
    %v543 = vunpack.c.h.b16 %v88
    %v544 = vunpack.c.l.b16 %v89
    %v545 = vunpack.c.h.b16 %v89
    %v546 = vunpack.c.l.b16 %v90
    %v547 = vunpack.c.h.b16 %v90
    %v548 = vunpack.c.l.b16 %v91
    %v549 = vunpack.c.h.b16 %v91
    %v550 = vunpack.c.l.b16 %v92
    %v551 = vunpack.c.h.b16 %v92
    %v552 = vunpack.c.l.b16 %v93
    %v553 = vunpack.c.h.b16 %v93
    %v554 = vunpack.c.l.b16 %v94
    %v555 = vunpack.c.h.b16 %v94
    %v556 = vunpack.c.l.b16 %v95
    %v557 = vunpack.c.h.b16 %v95
    %v558 = vunpack.c.l.b16 %v96
    %v559 = vunpack.c.h.b16 %v96
    %v560 = vunpack.c.l.b16 %v97
    %v561 = vunpack.c.h.b16 %v97
    %v562 = vunpack.c.l.b16 %v98
    %v563 = vunpack.c.h.b16 %v98
    %v564 = vunpack.c.l.b16 %v99
    %v565 = vunpack.c.h.b16 %v99
    %v566 = vunpack.c.l.b16 %v100
    %v567 = vunpack.c.h.b16 %v100
    %v568 = vunpack.c.l.b16 %v101
    %v569 = vunpack.c.h.b16 %v101
    %v570 = vunpack.c.l.b16 %v102
    %v571 = vunpack.c.h.b16 %v102
    %v572 = vunpack.c.l.b16 %v103
    %v573 = vunpack.c.h.b16 %v103
    %v574 = vunpack.c.l.b16 %v104
    %v575 = vunpack.c.h.b16 %v104
    %v576 = vunpack.c.l.b16 %v105
    %v577 = vunpack.c.h.b16 %v105
    %v578 = vunpack.c.l.b16 %v106
    %v579 = vunpack.c.h.b16 %v106
    %v580 = vunpack.c.l.b16 %v107
    %v581 = vunpack.c.h.b16 %v107
    %v582 = vunpack.c.l.b16 %v108
    %v583 = vunpack.c.h.b16 %v108
    %v584 = vunpack.c.l.b16 %v109
    %v585 = vunpack.c.h.b16 %v109
    %v586 = vunpack.c.l.b16 %v110
    %v587 = vunpack.c.h.b16 %v110
    %v588 = vunpack.c.l.b16 %v111
    %v589 = vunpack.c.h.b16 %v111
    %v590 = vunpack.c.l.b16 %v112
    %v591 = vunpack.c.h.b16 %v112
    %v592 = vunpack.c.l.b16 %v113
    %v593 = vunpack.c.h.b16 %v113
    %v594 = vunpack.c.l.b16 %v114
    %v595 = vunpack.c.h.b16 %v114
    %v596 = vunpack.c.l.b16 %v115
    %v597 = vunpack.c.h.b16 %v115
    %v598 = vunpack.c.l.b16 %v116
    %v599 = vunpack.c.h.b16 %v116
    %v600 = vunpack.c.l.b16 %v117
    %v601 = vunpack.c.h.b16 %v117
    %v602 = vunpack.c.l.b16 %v118
    %v603 = vunpack.c.h.b16 %v118
    %v604 = vunpack.c.l.b16 %v119
    %v605 = vunpack.c.h.b16 %v119
    %v606 = vunpack.c.l.b16 %v120
    %v607 = vunpack.c.h.b16 %v120
    %v608 = vunpack.c.l.b16 %v121
    %v609 = vunpack.c.h.b16 %v121
    %v610 = vunpack.c.l.b16 %v122
    %v611 = vunpack.c.h.b16 %v122
    %v612 = vunpack.c.l.b16 %v123
    %v613 = vunpack.c.h.b16 %v123
    %v614 = vunpack.c.l.b16 %v124
    %v615 = vunpack.c.h.b16 %v124
    %v616 = vunpack.c.l.b16 %v125
    %v617 = vunpack.c.h.b16 %v125
    %v618 = vunpack.c.l.b16 %v126
    %v619 = vunpack.c.h.b16 %v126
    %v620 = vunpack.c.l.b16 %v127
    %v621 = vunpack.c.h.b16 %v127
    %v622 = vunpack.c.l.b16 %v128
    %v623 = vunpack.c.h.b16 %v128
    %v624 = vunpack.c.l.b16 %v129
    %v625 = vunpack.c.h.b16 %v129
    %v626 = vunpack.c.l.b16 %v130
    %v627 = vunpack.c.h.b16 %v130
    %v628 = vunpack.c.l.b16 %v131
    %v629 = vunpack.c.h.b16 %v131
    %v630 = vunpack.c.l.b16 %v132
    %v631 = vunpack.c.h.b16 %v132
    %v632 = vunpack.c.l.b16 %v133
    %v633 = vunpack.c.h.b16 %v133
    %v634 = vunpack.c.l.b16 %v134
    %v635 = vunpack.c.h.b16 %v134
    %v636 = vunpack.c.l.b16 %v135
    %v637 = vunpack.c.h.b16 %v135
    %v638 = vunpack.c.l.b16 %v136
    %v639 = vunpack.c.h.b16 %v136
    %v640 = vunpack.c.l.b16 %v137
    %v641 = vunpack.c.h.b16 %v137
    %v642 = vunpack.c.l.b16 %v138
    %v643 = vunpack.c.h.b16 %v138
    %v644 = vunpack.c.l.b16 %v139
    %v645 = vunpack.c.h.b16 %v139
    %v646 = vunpack.c.l.b16 %v140
    %v647 = vunpack.c.h.b16 %v140
    %v648 = vunpack.c.l.b16 %v141
    %v649 = vunpack.c.h.b16 %v141
    %v650 = vunpack.c.l.b16 %v142
    %v651 = vunpack.c.h.b16 %v142
    %v652 = vunpack.c.l.b16 %v143
    %v653 = vunpack.c.h.b16 %v143
    %v654 = vunpack.c.l.b16 %v144
    %v655 = vunpack.c.h.b16 %v144
    %v656 = vunpack.c.l.b16 %v145
    %v657 = vunpack.c.h.b16 %v145
    %v658 = vunpack.c.l.b16 %v146
    %v659 = vunpack.c.h.b16 %v146
    %v660 = vunpack.c.l.b16 %v147
    %v661 = vunpack.c.h.b16 %v147
    %v662 = vunpack.c.l.b16 %v148
    %v663 = vunpack.c.h.b16 %v148
    %v664 = vunpack.c.l.b16 %v149
    %v665 = vunpack.c.h.b16 %v149
    %v666 = vunpack.c.l.b16 %v150
    %v667 = vunpack.c.h.b16 %v150
    %v668 = vunpack.c.l.b16 %v151
    %v669 = vunpack.c.h.b16 %v151
    %v670 = vunpack.c.l.b16 %v152
    %v671 = vunpack.c.h.b16 %v152
    %v672 = vunpack.c.l.b16 %v153
    %v673 = vunpack.c.h.b16 %v153
    %v674 = vunpack.c.l.b16 %v154
    %v675 = vunpack.c.h.b16 %v154
    %v676 = vunpack.c.l.b16 %v155
    %v677 = vunpack.c.h.b16 %v155
    %v678 = vunpack.c.l.b16 %v156
    %v679 = vunpack.c.h.b16 %v156
    %v680 = vunpack.c.l.b16 %v157
    %v681 = vunpack.c.h.b16 %v157
    %v682 = vunpack.c.l.b16 %v158
    %v683 = vunpack.c.h.b16 %v158
    %v684 = vunpack.c.l.b16 %v159
    %v685 = vunpack.c.h.b16 %v159
    %v686 = vunpack.c.l.b16 %v160
    %v687 = vunpack.c.h.b16 %v160
    %v688 = vunpack.c.l.b16 %v161
    %v689 = vunpack.c.h.b16 %v161
    %v690 = vunpack.c.l.b16 %v162
    %v691 = vunpack.c.h.b16 %v162
    %v692 = vunpack.c.l.b16 %v163
    %v693 = vunpack.c.h.b16 %v163
    %v694 = vunpack.c.l.b16 %v164
    %v695 = vunpack.c.h.b16 %v164
    %v696 = vunpack.c.l.b16 %v165
    %v697 = vunpack.c.h.b16 %v165
    %v698 = vunpack.c.l.b16 %v166
    %v699 = vunpack.c.h.b16 %v166
    %v700 = vunpack.c.l.b16 %v167
    %v701 = vunpack.c.h.b16 %v167
    %v702 = vunpack.c.l.b16 %v168
    %v703 = vunpack.c.h.b16 %v168
    %v704 = vunpack.c.l.b16 %v169
    %v705 = vunpack.c.h.b16 %v169
    %v706 = vunpack.c.l.b16 %v170
    %v707 = vunpack.c.h.b16 %v170
    %v708 = vunpack.c.l.b16 %v171
    %v709 = vunpack.c.h.b16 %v171
    %v710 = vunpack.c.l.b16 %v172
    %v711 = vunpack.c.h.b16 %v172
    %v712 = vunpack.c.l.b16 %v173
    %v713 = vunpack.c.h.b16 %v173
    %v714 = vunpack.c.l.b16 %v174
    %v715 = vunpack.c.h.b16 %v174
    %v716 = vunpack.c.l.b16 %v175
    %v717 = vunpack.c.h.b16 %v175
    %v718 = vunpack.c.l.b16 %v176
    %v719 = vunpack.c.h.b16 %v176
    %v720 = vunpack.c.l.b16 %v177
    %v721 = vunpack.c.h.b16 %v177
    %v722 = vunpack.c.l.b16 %v178
    %v723 = vunpack.c.h.b16 %v178
    %v724 = vunpack.c.l.b16 %v179
    %v725 = vunpack.c.h.b16 %v179
    %v726 = vunpack.c.l.b16 %v180
    %v727 = vunpack.c.h.b16 %v180
    %v728 = vunpack.c.l.b16 %v181
    %v729 = vunpack.c.h.b16 %v181
    %v730 = vunpack.c.l.b16 %v182
    %v731 = vunpack.c.h.b16 %v182
    %v732 = vunpack.c.l.b16 %v183
    %v733 = vunpack.c.h.b16 %v183
    %v734 = vunpack.c.l.b16 %v184
    %v735 = vunpack.c.h.b16 %v184
    %v736 = vunpack.c.l.b16 %v185
    %v737 = vunpack.c.h.b16 %v185
    %v738 = vunpack.c.l.b16 %v186
    %v739 = vunpack.c.h.b16 %v186
    %v740 = vunpack.c.l.b16 %v187
    %v741 = vunpack.c.h.b16 %v187
    %v742 = vunpack.c.l.b16 %v188
    %v743 = vunpack.c.h.b16 %v188
    %v744 = vunpack.c.l.b16 %v189
    %v745 = vunpack.c.h.b16 %v189
    %v746 = vunpack.c.l.b16 %v190
    %v747 = vunpack.c.h.b16 %v190
    %v748 = vunpack.c.l.b16 %v191
    %v749 = vunpack.c.h.b16 %v191
    %v750 = vunpack.c.l.b16 %v192
    %v751 = vunpack.c.h.b16 %v192
    %v752 = vunpack.c.l.b16 %v193
    %v753 = vunpack.c.h.b16 %v193
    %v754 = vunpack.c.l.b16 %v194
    %v755 = vunpack.c.h.b16 %v194
    %v756 = vunpack.c.l.b16 %v195
    %v757 = vunpack.c.h.b16 %v195
    %v758 = vunpack.c.l.b16 %v196
    %v759 = vunpack.c.h.b16 %v196
    %v760 = vunpack.c.l.b16 %v197
    %v761 = vunpack.c.h.b16 %v197
    %v762 = vunpack.c.l.b16 %v198
    %v763 = vunpack.c.h.b16 %v198
    %v764 = vunpack.c.l.b16 %v199
    %v765 = vunpack.c.h.b16 %v199
    %v766 = vunpack.c.l.b16 %v200
    %v767 = vunpack.c.h.b16 %v200
    %v768 = vunpack.c.l.b16 %v201
    %v769 = vunpack.c.h.b16 %v201
    %v770 = vunpack.c.l.b16 %v202
    %v771 = vunpack.c.h.b16 %v202
    %v772 = vunpack.c.l.b16 %v203
    %v773 = vunpack.c.h.b16 %v203
    %v774 = vunpack.c.l.b16 %v204
    %v775 = vunpack.c.h.b16 %v204
    %v776 = vunpack.c.l.b16 %v205
    %v777 = vunpack.c.h.b16 %v205
    %v778 = vunpack.c.l.b16 %v206
    %v779 = vunpack.c.h.b16 %v206
    %v780 = vunpack.c.l.b16 %v207
    %v781 = vunpack.c.h.b16 %v207
    %v782 = vunpack.c.l.b16 %v208
    %v783 = vunpack.c.h.b16 %v208
    %v784 = vunpack.c.l.b16 %v209
    %v785 = vunpack.c.h.b16 %v209
    %v786 = vunpack.c.l.b16 %v210
    %v787 = vunpack.c.h.b16 %v210
    %v788 = vunpack.c.l.b16 %v211
    %v789 = vunpack.c.h.b16 %v211
    %v790 = vunpack.c.l.b16 %v212
    %v791 = vunpack.c.h.b16 %v212
    %v792 = vunpack.c.l.b16 %v213
    %v793 = vunpack.c.h.b16 %v213
    %v794 = vunpack.c.l.b16 %v214
    %v795 = vunpack.c.h.b16 %v214
    %v796 = vunpack.c.l.b16 %v215
    %v797 = vunpack.c.h.b16 %v215
    %v798 = vunpack.c.l.b16 %v216
    %v799 = vunpack.c.h.b16 %v216
    %v800 = vunpack.c.l.b16 %v217
    %v801 = vunpack.c.h.b16 %v217
    %v802 = vunpack.c.l.b16 %v218
    %v803 = vunpack.c.h.b16 %v218
    %v804 = vunpack.c.l.b16 %v219
    %v805 = vunpack.c.h.b16 %v219
    %v806 = vunpack.c.l.b16 %v220
    %v807 = vunpack.c.h.b16 %v220
    %v808 = vunpack.c.l.b16 %v221
    %v809 = vunpack.c.h.b16 %v221
    %v810 = vunpack.c.l.b16 %v222
    %v811 = vunpack.c.h.b16 %v222
    %v812 = vunpack.c.l.b16 %v223
    %v813 = vunpack.c.h.b16 %v223
    %v814 = vunpack.c.l.b16 %v224
    %v815 = vunpack.c.h.b16 %v224
    %v816 = vunpack.c.l.b16 %v225
    %v817 = vunpack.c.h.b16 %v225
    %v818 = vunpack.c.l.b16 %v226
    %v819 = vunpack.c.h.b16 %v226
    %v820 = vunpack.c.l.b16 %v227
    %v821 = vunpack.c.h.b16 %v227
    %v822 = vunpack.c.l.b16 %v228
    %v823 = vunpack.c.h.b16 %v228
    %v824 = vunpack.c.l.b16 %v229
    %v825 = vunpack.c.h.b16 %v229
    %v826 = vunpack.c.l.b16 %v230
    %v827 = vunpack.c.h.b16 %v230
    %v828 = vunpack.c.l.b16 %v231
    %v829 = vunpack.c.h.b16 %v231
    %v830 = vpack.c.b16 %v450, %v446
    %v831 = vpack.c.b16 %v451, %v447
    %v832 = vpack.c.b16 %v452, %v448
    %v833 = vpack.c.b16 %v453, %v449
    %v834 = vpack.c.b16 %v458, %v454
    %v835 = vpack.c.b16 %v459, %v455
    %v836 = vpack.c.b16 %v460, %v456
    %v837 = vpack.c.b16 %v461, %v457
    %v838 = vpack.c.b16 %v466, %v462
    %v839 = vpack.c.b16 %v467, %v463
    %v840 = vpack.c.b16 %v468, %v464
    %v841 = vpack.c.b16 %v469, %v465
    %v842 = vpack.c.b16 %v474, %v470
    %v843 = vpack.c.b16 %v475, %v471
    %v844 = vpack.c.b16 %v476, %v472
    %v845 = vpack.c.b16 %v477, %v473
    %v846 = vpack.c.b16 %v482, %v478
    %v847 = vpack.c.b16 %v483, %v479
    %v848 = vpack.c.b16 %v484, %v480
    %v849 = vpack.c.b16 %v485, %v481
    %v850 = vpack.c.b16 %v490, %v486
    %v851 = vpack.c.b16 %v491, %v487
    %v852 = vpack.c.b16 %v492, %v488
    %v853 = vpack.c.b16 %v493, %v489
    %v854 = vpack.c.b16 %v498, %v494
    %v855 = vpack.c.b16 %v499, %v495
    %v856 = vpack.c.b16 %v500, %v496
    %v857 = vpack.c.b16 %v501, %v497
    %v858 = vpack.c.b16 %v506, %v502
    %v859 = vpack.c.b16 %v507, %v503
    %v860 = vpack.c.b16 %v508, %v504
    %v861 = vpack.c.b16 %v509, %v505
    %v862 = vpack.c.b16 %v514, %v510
    %v863 = vpack.c.b16 %v515, %v511
    %v864 = vpack.c.b16 %v516, %v512
    %v865 = vpack.c.b16 %v517, %v513
    %v866 = vpack.c.b16 %v522, %v518
    %v867 = vpack.c.b16 %v523, %v519
    %v868 = vpack.c.b16 %v524, %v520
    %v869 = vpack.c.b16 %v525, %v521
    %v870 = vpack.c.b16 %v530, %v526
    %v871 = vpack.c.b16 %v531, %v527
    %v872 = vpack.c.b16 %v532, %v528
    %v873 = vpack.c.b16 %v533, %v529
    %v874 = vpack.c.b16 %v538, %v534
    %v875 = vpack.c.b16 %v539, %v535
    %v876 = vpack.c.b16 %v540, %v536
    %v877 = vpack.c.b16 %v541, %v537
    %v878 = vpack.c.b16 %v546, %v542
    %v879 = vpack.c.b16 %v547, %v543
    %v880 = vpack.c.b16 %v548, %v544
    %v881 = vpack.c.b16 %v549, %v545
    %v882 = vpack.c.b16 %v554, %v550
    %v883 = vpack.c.b16 %v555, %v551
    %v884 = vpack.c.b16 %v556, %v552
    %v885 = vpack.c.b16 %v557, %v553
    %v886 = vpack.c.b16 %v562, %v558
    %v887 = vpack.c.b16 %v563, %v559
    %v888 = vpack.c.b16 %v564, %v560
    %v889 = vpack.c.b16 %v565, %v561
    %v890 = vpack.c.b16 %v570, %v566
    %v891 = vpack.c.b16 %v571, %v567
    %v892 = vpack.c.b16 %v572, %v568
    %v893 = vpack.c.b16 %v573, %v569
    %v894 = vpack.c.b16 %v578, %v574
    %v895 = vpack.c.b16 %v579, %v575
    %v896 = vpack.c.b16 %v580, %v576
    %v897 = vpack.c.b16 %v581, %v577
    %v898 = vpack.c.b16 %v586, %v582
    %v899 = vpack.c.b16 %v587, %v583
    %v900 = vpack.c.b16 %v588, %v584
    %v901 = vpack.c.b16 %v589, %v585
    %v902 = vpack.c.b16 %v594, %v590
    %v903 = vpack.c.b16 %v595, %v591
    %v904 = vpack.c.b16 %v596, %v592
    %v905 = vpack.c.b16 %v597, %v593
    %v906 = vpack.c.b16 %v602, %v598
    %v907 = vpack.c.b16 %v603, %v599
    %v908 = vpack.c.b16 %v604, %v600
    %v909 = vpack.c.b16 %v605, %v601
    %v910 = vpack.c.b16 %v610, %v606
    %v911 = vpack.c.b16 %v611, %v607
    %v912 = vpack.c.b16 %v612, %v608
    %v913 = vpack.c.b16 %v613, %v609
    %v914 = vpack.c.b16 %v618, %v614
    %v915 = vpack.c.b16 %v619, %v615
    %v916 = vpack.c.b16 %v620, %v616
    %v917 = vpack.c.b16 %v621, %v617
    %v918 = vpack.c.b16 %v626, %v622
    %v919 = vpack.c.b16 %v627, %v623
    %v920 = vpack.c.b16 %v628, %v624
    %v921 = vpack.c.b16 %v629, %v625
    %v922 = vpack.c.b16 %v634, %v630
    %v923 = vpack.c.b16 %v635, %v631
    %v924 = vpack.c.b16 %v636, %v632
    %v925 = vpack.c.b16 %v637, %v633
    %v926 = vpack.c.b16 %v642, %v638
    %v927 = vpack.c.b16 %v643, %v639
    %v928 = vpack.c.b16 %v644, %v640
    %v929 = vpack.c.b16 %v645, %v641
    %v930 = vpack.c.b16 %v650, %v646
    %v931 = vpack.c.b16 %v651, %v647
    %v932 = vpack.c.b16 %v652, %v648
    %v933 = vpack.c.b16 %v653, %v649
    %v934 = vpack.c.b16 %v658, %v654
    %v935 = vpack.c.b16 %v659, %v655
    %v936 = vpack.c.b16 %v660, %v656
    %v937 = vpack.c.b16 %v661, %v657
    %v938 = vpack.c.b16 %v666, %v662
    %v939 = vpack.c.b16 %v667, %v663
    %v940 = vpack.c.b16 %v668, %v664
    %v941 = vpack.c.b16 %v669, %v665
    %v942 = vpack.c.b16 %v674, %v670
    %v943 = vpack.c.b16 %v675, %v671
    %v944 = vpack.c.b16 %v676, %v672
    %v945 = vpack.c.b16 %v677, %v673
    %v946 = vpack.c.b16 %v682, %v678
    %v947 = vpack.c.b16 %v683, %v679
    %v948 = vpack.c.b16 %v684, %v680
    %v949 = vpack.c.b16 %v685, %v681
    %v950 = vpack.c.b16 %v690, %v686
    %v951 = vpack.c.b16 %v691, %v687
    %v952 = vpack.c.b16 %v692, %v688
    %v953 = vpack.c.b16 %v693, %v689
    %v954 = vpack.c.b16 %v698, %v694
    %v955 = vpack.c.b16 %v699, %v695
    %v956 = vpack.c.b16 %v700, %v696
    %v957 = vpack.c.b16 %v701, %v697
    %v958 = vpack.c.b16 %v706, %v702
    %v959 = vpack.c.b16 %v707, %v703
    %v960 = vpack.c.b16 %v708, %v704
    %v961 = vpack.c.b16 %v709, %v705
    %v962 = vpack.c.b16 %v714, %v710
    %v963 = vpack.c.b16 %v715, %v711
    %v964 = vpack.c.b16 %v716, %v712
    %v965 = vpack.c.b16 %v717, %v713
    %v966 = vpack.c.b16 %v722, %v718
    %v967 = vpack.c.b16 %v723, %v719
    %v968 = vpack.c.b16 %v724, %v720
    %v969 = vpack.c.b16 %v725, %v721
    %v970 = vpack.c.b16 %v730, %v726
    %v971 = vpack.c.b16 %v731, %v727
    %v972 = vpack.c.b16 %v732, %v728
    %v973 = vpack.c.b16 %v733, %v729
    %v974 = vpack.c.b16 %v738, %v734
    %v975 = vpack.c.b16 %v739, %v735
    %v976 = vpack.c.b16 %v740, %v736
    %v977 = vpack.c.b16 %v741, %v737
    %v978 = vpack.c.b16 %v746, %v742
    %v979 = vpack.c.b16 %v747, %v743
    %v980 = vpack.c.b16 %v748, %v744
    %v981 = vpack.c.b16 %v749, %v745
    %v982 = vpack.c.b16 %v754, %v750
    %v983 = vpack.c.b16 %v755, %v751
    %v984 = vpack.c.b16 %v756, %v752
    %v985 = vpack.c.b16 %v757, %v753
    %v986 = vpack.c.b16 %v762, %v758
    %v987 = vpack.c.b16 %v763, %v759
    %v988 = vpack.c.b16 %v764, %v760
    %v989 = vpack.c.b16 %v765, %v761
    %v990 = vpack.c.b16 %v770, %v766
    %v991 = vpack.c.b16 %v771, %v767
    %v992 = vpack.c.b16 %v772, %v768
    %v993 = vpack.c.b16 %v773, %v769
    %v994 = vpack.c.b16 %v778, %v774
    %v995 = vpack.c.b16 %v779, %v775
    %v996 = vpack.c.b16 %v780, %v776
    %v997 = vpack.c.b16 %v781, %v777
    %v998 = vpack.c.b16 %v786, %v782
    %v999 = vpack.c.b16 %v787, %v783
    %v1000 = vpack.c.b16 %v788, %v784
    %v1001 = vpack.c.b16 %v789, %v785
    %v1002 = vpack.c.b16 %v794, %v790
    %v1003 = vpack.c.b16 %v795, %v791
    %v1004 = vpack.c.b16 %v796, %v792
    %v1005 = vpack.c.b16 %v797, %v793
    %v1006 = vpack.c.b16 %v802, %v798
    %v1007 = vpack.c.b16 %v803, %v799
    %v1008 = vpack.c.b16 %v804, %v800
    %v1009 = vpack.c.b16 %v805, %v801
    %v1010 = vpack.c.b16 %v810, %v806
    %v1011 = vpack.c.b16 %v811, %v807
    %v1012 = vpack.c.b16 %v812, %v808
    %v1013 = vpack.c.b16 %v813, %v809
    %v1014 = vpack.c.b16 %v818, %v814
    %v1015 = vpack.c.b16 %v819, %v815
    %v1016 = vpack.c.b16 %v820, %v816
    %v1017 = vpack.c.b16 %v821, %v817
    %v1018 = vpack.c.b16 %v826, %v822
    %v1019 = vpack.c.b16 %v827, %v823
    %v1020 = vpack.c.b16 %v828, %v824
    %v1021 = vpack.c.b16 %v829, %v825
    %1214 = vmatprep.subr.bf16.mxu0 %v831
    %1215 = vmatpush1.bf16.msra.mxu0 %v830
    %1216 = vmatprep.subr.bf16.mxu0 %v835
    %1217 = vmatpush1.bf16.msra.mxu0 %v834
    %1218 = vmatprep.subr.bf16.mxu0 %v839
    %1219 = vmatpush1.bf16.msra.mxu0 %v838
    %1220 = vmatprep.subr.bf16.mxu0 %v843
    %1221 = vmatpush1.bf16.msra.mxu0 %v842
    %1222 = vmatprep.subr.bf16.mxu0 %v847
    %1223 = vmatpush1.bf16.msra.mxu0 %v846
    %1224 = vmatprep.subr.bf16.mxu0 %v851
    %1225 = vmatpush1.bf16.msra.mxu0 %v850
    %1226 = vmatprep.subr.bf16.mxu0 %v855
    %1227 = vmatpush1.bf16.msra.mxu0 %v854
    %1228 = vmatprep.subr.bf16.mxu0 %v859
    %1229 = vmatpush1.bf16.msra.mxu0 %v858
    %1230 = vmatprep.subr.bf16.mxu0 %v863
    %1231 = vmatpush1.bf16.msra.mxu0 %v862
    %1232 = vmatprep.subr.bf16.mxu0 %v867
    %1233 = vmatpush1.bf16.msra.mxu0 %v866
    %1234 = vmatprep.subr.bf16.mxu0 %v871
    %1235 = vmatpush1.bf16.msra.mxu0 %v870
    %1236 = vmatprep.subr.bf16.mxu0 %v875
    %1237 = vmatpush1.bf16.msra.mxu0 %v874
    %1238 = vmatprep.subr.bf16.mxu0 %v879
    %1239 = vmatpush1.bf16.msra.mxu0 %v878
    %1240 = vmatprep.subr.bf16.mxu0 %v883
    %1241 = vmatpush1.bf16.msra.mxu0 %v882
    %1242 = vmatprep.subr.bf16.mxu0 %v887
    %1243 = vmatpush1.bf16.msra.mxu0 %v886
    %1244 = vmatprep.subr.bf16.mxu0 %v891
    %1245 = vmatpush1.bf16.msra.mxu0 %v890
    %1246 = vmatprep.mubr.bf16.mxu0 %v35
    %1247 = vmatmul.mubr.bf16.gmra.mrb[0].mxu0 %v34
    %v1248 = vpop.f32.mrb[0].mxu0
    %v1249 = vadd.f32 %v237, %v1248
    %v1250 = vpop.f32.mrb[0].mxu0
    %v1251 = vadd.f32 %v241, %v1250
    %v1252 = vpop.f32.mrb[0].mxu0
    %v1253 = vadd.f32 %v237, %v1252
    %v1254 = vpop.f32.mrb[0].mxu0
    %v1255 = vadd.f32 %v241, %v1254
    %1256 = vdwg.mxu0
    %1257 = vmatprep.subr.bf16.mxu0 %v895
    %1258 = vmatpush1.bf16.msra.mxu0 %v894
    %1259 = vmatprep.subr.bf16.mxu0 %v899
    %1260 = vmatpush1.bf16.msra.mxu0 %v898
    %1261 = vmatprep.subr.bf16.mxu0 %v903
    %1262 = vmatpush1.bf16.msra.mxu0 %v902
    %1263 = vmatprep.subr.bf16.mxu0 %v907
    %1264 = vmatpush1.bf16.msra.mxu0 %v906
    %1265 = vmatprep.subr.bf16.mxu0 %v911
    %1266 = vmatpush1.bf16.msra.mxu0 %v910
    %1267 = vmatprep.subr.bf16.mxu0 %v915
    %1268 = vmatpush1.bf16.msra.mxu0 %v914
    %1269 = vmatprep.subr.bf16.mxu0 %v919
    %1270 = vmatpush1.bf16.msra.mxu0 %v918
    %1271 = vmatprep.subr.bf16.mxu0 %v923
    %1272 = vmatpush1.bf16.msra.mxu0 %v922
    %1273 = vmatprep.subr.bf16.mxu0 %v927
    %1274 = vmatpush1.bf16.msra.mxu0 %v926
    %1275 = vmatprep.subr.bf16.mxu0 %v931
    %1276 = vmatpush1.bf16.msra.mxu0 %v930
    %1277 = vmatprep.subr.bf16.mxu0 %v935
    %1278 = vmatpush1.bf16.msra.mxu0 %v934
    %1279 = vmatprep.subr.bf16.mxu0 %v939
    %1280 = vmatpush1.bf16.msra.mxu0 %v938
    %1281 = vmatprep.subr.bf16.mxu0 %v943
    %1282 = vmatpush1.bf16.msra.mxu0 %v942
    %1283 = vmatprep.subr.bf16.mxu0 %v947
    %1284 = vmatpush1.bf16.msra.mxu0 %v946
    %1285 = vmatprep.subr.bf16.mxu0 %v951
    %1286 = vmatpush1.bf16.msra.mxu0 %v950
    %1287 = vmatprep.subr.bf16.mxu0 %v955
    %1288 = vmatpush1.bf16.msra.mxu0 %v954
    %1289 = vmatprep.mubr.bf16.mxu0 %v37
    %1290 = vmatmul.mubr.bf16.gmra.mrb[0].mxu0 %v36
    %v1291 = vpop.f32.mrb[0].mxu0
    %v1292 = vadd.f32 %v1249, %v1291
    %v1293 = vpop.f32.mrb[0].mxu0
    %v1294 = vadd.f32 %v1251, %v1293
    %v1295 = vpop.f32.mrb[0].mxu0
    %v1296 = vadd.f32 %v1253, %v1295
    %v1297 = vpop.f32.mrb[0].mxu0
    %v1298 = vadd.f32 %v1255, %v1297
    %1299 = vdwg.mxu0
    %1300 = vmatprep.subr.bf16.mxu0 %v959
    %1301 = vmatpush1.bf16.msra.mxu0 %v958
    %1302 = vmatprep.subr.bf16.mxu0 %v963
    %1303 = vmatpush1.bf16.msra.mxu0 %v962
    %1304 = vmatprep.subr.bf16.mxu0 %v967
    %1305 = vmatpush1.bf16.msra.mxu0 %v966
    %1306 = vmatprep.subr.bf16.mxu0 %v971
    %1307 = vmatpush1.bf16.msra.mxu0 %v970
    %1308 = vmatprep.subr.bf16.mxu0 %v975
    %1309 = vmatpush1.bf16.msra.mxu0 %v974
    %1310 = vmatprep.subr.bf16.mxu0 %v979
    %1311 = vmatpush1.bf16.msra.mxu0 %v978
    %1312 = vmatprep.subr.bf16.mxu0 %v983
    %1313 = vmatpush1.bf16.msra.mxu0 %v982
    %1314 = vmatprep.subr.bf16.mxu0 %v987
    %1315 = vmatpush1.bf16.msra.mxu0 %v986
    %1316 = vmatprep.subr.bf16.mxu0 %v991
    %1317 = vmatpush1.bf16.msra.mxu0 %v990
    %1318 = vmatprep.subr.bf16.mxu0 %v995
    %1319 = vmatpush1.bf16.msra.mxu0 %v994
    %1320 = vmatprep.subr.bf16.mxu0 %v999
    %1321 = vmatpush1.bf16.msra.mxu0 %v998
    %1322 = vmatprep.subr.bf16.mxu0 %v1003
    %1323 = vmatpush1.bf16.msra.mxu0 %v1002
    %1324 = vmatprep.subr.bf16.mxu0 %v1007
    %1325 = vmatpush1.bf16.msra.mxu0 %v1006
    %1326 = vmatprep.subr.bf16.mxu0 %v1011
    %1327 = vmatpush1.bf16.msra.mxu0 %v1010
    %1328 = vmatprep.subr.bf16.mxu0 %v1015
    %1329 = vmatpush1.bf16.msra.mxu0 %v1014
    %1330 = vmatprep.subr.bf16.mxu0 %v1019
    %1331 = vmatpush1.bf16.msra.mxu0 %v1018
    %1332 = vmatprep.mubr.bf16.mxu0 %v39
    %1333 = vmatmul.mubr.bf16.gmra.mrb[0].mxu0 %v38
    %v1334 = vpop.f32.mrb[0].mxu0
    %v1335 = vadd.f32 %v1292, %v1334
    %v1336 = vpop.f32.mrb[0].mxu0
    %v1337 = vadd.f32 %v1294, %v1336
    %v1338 = vpop.f32.mrb[0].mxu0
    %v1339 = vadd.f32 %v1296, %v1338
    %v1340 = vpop.f32.mrb[0].mxu0
    %v1341 = vadd.f32 %v1298, %v1340
    %1342 = vdwg.mxu0
    %1343 = vmatprep.subr.bf16.mxu0 %v833
    %1344 = vmatpush1.bf16.msra.mxu0 %v832
    %1345 = vmatprep.subr.bf16.mxu0 %v837
    %1346 = vmatpush1.bf16.msra.mxu0 %v836
    %1347 = vmatprep.subr.bf16.mxu0 %v841
    %1348 = vmatpush1.bf16.msra.mxu0 %v840
    %1349 = vmatprep.subr.bf16.mxu0 %v845
    %1350 = vmatpush1.bf16.msra.mxu0 %v844
    %1351 = vmatprep.subr.bf16.mxu0 %v849
    %1352 = vmatpush1.bf16.msra.mxu0 %v848
    %1353 = vmatprep.subr.bf16.mxu0 %v853
    %1354 = vmatpush1.bf16.msra.mxu0 %v852
    %1355 = vmatprep.subr.bf16.mxu0 %v857
    %1356 = vmatpush1.bf16.msra.mxu0 %v856
    %1357 = vmatprep.subr.bf16.mxu0 %v861
    %1358 = vmatpush1.bf16.msra.mxu0 %v860
    %1359 = vmatprep.subr.bf16.mxu0 %v865
    %1360 = vmatpush1.bf16.msra.mxu0 %v864
    %1361 = vmatprep.subr.bf16.mxu0 %v869
    %1362 = vmatpush1.bf16.msra.mxu0 %v868
    %1363 = vmatprep.subr.bf16.mxu0 %v873
    %1364 = vmatpush1.bf16.msra.mxu0 %v872
    %1365 = vmatprep.subr.bf16.mxu0 %v877
    %1366 = vmatpush1.bf16.msra.mxu0 %v876
    %1367 = vmatprep.subr.bf16.mxu0 %v881
    %1368 = vmatpush1.bf16.msra.mxu0 %v880
    %1369 = vmatprep.subr.bf16.mxu0 %v885
    %1370 = vmatpush1.bf16.msra.mxu0 %v884
    %1371 = vmatprep.subr.bf16.mxu0 %v889
    %1372 = vmatpush1.bf16.msra.mxu0 %v888
    %1373 = vmatprep.subr.bf16.mxu0 %v893
    %1374 = vmatpush1.bf16.msra.mxu0 %v892
    %1375 = vmatprep.mubr.bf16.mxu0 %v35
    %1376 = vmatmul.mubr.bf16.gmra.mrb[0].mxu0 %v34
    %v1377 = vpop.f32.mrb[0].mxu0
    %v1378 = vadd.f32 %v245, %v1377
    %v1379 = vpop.f32.mrb[0].mxu0
    %v1380 = vadd.f32 %v249, %v1379
    %v1381 = vpop.f32.mrb[0].mxu0
    %v1382 = vadd.f32 %v245, %v1381
    %v1383 = vpop.f32.mrb[0].mxu0
    %v1384 = vadd.f32 %v249, %v1383
    %1385 = vdwg.mxu0
    %1386 = vmatprep.subr.bf16.mxu0 %v897
    %1387 = vmatpush1.bf16.msra.mxu0 %v896
    %1388 = vmatprep.subr.bf16.mxu0 %v901
    %1389 = vmatpush1.bf16.msra.mxu0 %v900
    %1390 = vmatprep.subr.bf16.mxu0 %v905
    %1391 = vmatpush1.bf16.msra.mxu0 %v904
    %1392 = vmatprep.subr.bf16.mxu0 %v909
    %1393 = vmatpush1.bf16.msra.mxu0 %v908
    %1394 = vmatprep.subr.bf16.mxu0 %v913
    %1395 = vmatpush1.bf16.msra.mxu0 %v912
    %1396 = vmatprep.subr.bf16.mxu0 %v917
    %1397 = vmatpush1.bf16.msra.mxu0 %v916
    %1398 = vmatprep.subr.bf16.mxu0 %v921
    %1399 = vmatpush1.bf16.msra.mxu0 %v920
    %1400 = vmatprep.subr.bf16.mxu0 %v925
    %1401 = vmatpush1.bf16.msra.mxu0 %v924
    %1402 = vmatprep.subr.bf16.mxu0 %v929
    %1403 = vmatpush1.bf16.msra.mxu0 %v928
    %1404 = vmatprep.subr.bf16.mxu0 %v933
    %1405 = vmatpush1.bf16.msra.mxu0 %v932
    %1406 = vmatprep.subr.bf16.mxu0 %v937
    %1407 = vmatpush1.bf16.msra.mxu0 %v936
    %1408 = vmatprep.subr.bf16.mxu0 %v941
    %1409 = vmatpush1.bf16.msra.mxu0 %v940
    %1410 = vmatprep.subr.bf16.mxu0 %v945
    %1411 = vmatpush1.bf16.msra.mxu0 %v944
    %1412 = vmatprep.subr.bf16.mxu0 %v949
    %1413 = vmatpush1.bf16.msra.mxu0 %v948
    %1414 = vmatprep.subr.bf16.mxu0 %v953
    %1415 = vmatpush1.bf16.msra.mxu0 %v952
    %1416 = vmatprep.subr.bf16.mxu0 %v957
    %1417 = vmatpush1.bf16.msra.mxu0 %v956
    %1418 = vmatprep.mubr.bf16.mxu0 %v37
    %1419 = vmatmul.mubr.bf16.gmra.mrb[0].mxu0 %v36
    %v1420 = vpop.f32.mrb[0].mxu0
    %v1421 = vadd.f32 %v1378, %v1420
    %v1422 = vpop.f32.mrb[0].mxu0
    %v1423 = vadd.f32 %v1380, %v1422
    %v1424 = vpop.f32.mrb[0].mxu0
    %v1425 = vadd.f32 %v1382, %v1424
    %v1426 = vpop.f32.mrb[0].mxu0
    %v1427 = vadd.f32 %v1384, %v1426
    %1428 = vdwg.mxu0
    %1429 = vmatprep.subr.bf16.mxu0 %v961
    %1430 = vmatpush1.bf16.msra.mxu0 %v960
    %1431 = vmatprep.subr.bf16.mxu0 %v965
    %1432 = vmatpush1.bf16.msra.mxu0 %v964
    %1433 = vmatprep.subr.bf16.mxu0 %v969
    %1434 = vmatpush1.bf16.msra.mxu0 %v968
    %1435 = vmatprep.subr.bf16.mxu0 %v973
    %1436 = vmatpush1.bf16.msra.mxu0 %v972
    %1437 = vmatprep.subr.bf16.mxu0 %v977
    %1438 = vmatpush1.bf16.msra.mxu0 %v976
    %1439 = vmatprep.subr.bf16.mxu0 %v981
    %1440 = vmatpush1.bf16.msra.mxu0 %v980
    %1441 = vmatprep.subr.bf16.mxu0 %v985
    %1442 = vmatpush1.bf16.msra.mxu0 %v984
    %1443 = vmatprep.subr.bf16.mxu0 %v989
    %1444 = vmatpush1.bf16.msra.mxu0 %v988
    %1445 = vmatprep.subr.bf16.mxu0 %v993
    %1446 = vmatpush1.bf16.msra.mxu0 %v992
    %1447 = vmatprep.subr.bf16.mxu0 %v997
    %1448 = vmatpush1.bf16.msra.mxu0 %v996
    %1449 = vmatprep.subr.bf16.mxu0 %v1001
    %1450 = vmatpush1.bf16.msra.mxu0 %v1000
    %1451 = vmatprep.subr.bf16.mxu0 %v1005
    %1452 = vmatpush1.bf16.msra.mxu0 %v1004
    %1453 = vmatprep.subr.bf16.mxu0 %v1009
    %1454 = vmatpush1.bf16.msra.mxu0 %v1008
    %1455 = vmatprep.subr.bf16.mxu0 %v1013
    %1456 = vmatpush1.bf16.msra.mxu0 %v1012
    %1457 = vmatprep.subr.bf16.mxu0 %v1017
    %1458 = vmatpush1.bf16.msra.mxu0 %v1016
    %1459 = vmatprep.subr.bf16.mxu0 %v1021
    %1460 = vmatpush1.bf16.msra.mxu0 %v1020
    %1461 = vmatprep.mubr.bf16.mxu0 %v39
    %1462 = vmatmul.mubr.bf16.gmra.mrb[0].mxu0 %v38
    %v1463 = vpop.f32.mrb[0].mxu0
    %v1464 = vadd.f32 %v1421, %v1463
    %v1465 = vpop.f32.mrb[0].mxu0
    %v1466 = vadd.f32 %v1423, %v1465
    %v1467 = vpop.f32.mrb[0].mxu0
    %v1468 = vadd.f32 %v1425, %v1467
    %v1469 = vpop.f32.mrb[0].mxu0
    %v1470 = vadd.f32 %v1427, %v1469
    %1471 = vdwg.mxu0
    %v1472 = vmax.f32 %v1335, 0.0
    %v1473 = vmax.f32 %v1337, 0.0
    %v1474 = vmax.f32 %v1464, 0.0
    %v1475 = vmax.f32 %v1466, 0.0
    %v1476 = vmax.f32 %v1339, 0.0
    %v1477 = vmax.f32 %v1341, 0.0
    %v1478 = vmax.f32 %v1468, 0.0
    %v1479 = vmax.f32 %v1470, 0.0
    %v1480 = vpack.c.bf16 %v1476, %v1472
    %v1481 = vpack.c.bf16 %v1477, %v1473
    %v1482 = vpack.c.bf16 %v1478, %v1474
    %v1483 = vpack.c.bf16 %v1479, %v1475
    %v1484 = vld [vmem:[%s3] sm:$0xf]
    %v1485 = vld [vmem:[%s3 + $0x4] sm:$0xf]
    %v1486 = vld [vmem:[%s3 + $0x8] sm:$0xf]
    %v1487 = vld [vmem:[%s3 + $0xc] sm:$0xf]
    %v1488 = vld [vmem:[%s3 + $0x10] sm:$0xf]
    %v1489 = vld [vmem:[%s3 + $0x14] sm:$0xf]
    %v1490 = vld [vmem:[%s3 + $0x18] sm:$0xf]
    %v1491 = vld [vmem:[%s3 + $0x1c] sm:$0xf]
    %v1492 = vld [vmem:[%s3 + $0x20] sm:$0xf]
    %v1493 = vld [vmem:[%s3 + $0x24] sm:$0xf]
    %v1494 = vld [vmem:[%s3 + $0x28] sm:$0xf]
    %v1495 = vld [vmem:[%s3 + $0x2c] sm:$0xf]
    %v1496 = vld [vmem:[%s3 + $0x30] sm:$0xf]
    %v1497 = vld [vmem:[%s3 + $0x34] sm:$0xf]
    %v1498 = vld [vmem:[%s3 + $0x38] sm:$0xf]
    %v1499 = vld [vmem:[%s3 + $0x3c] sm:$0xf]
    %v1500 = vld [vmem:[%s3 + $0x40] sm:$0xf]
    %v1501 = vld [vmem:[%s3 + $0x44] sm:$0xf]
    %v1502 = vld [vmem:[%s3 + $0x48] sm:$0xf]
    %v1503 = vld [vmem:[%s3 + $0x4c] sm:$0xf]
    %v1504 = vld [vmem:[%s3 + $0x50] sm:$0xf]
    %v1505 = vld [vmem:[%s3 + $0x54] sm:$0xf]
    %v1506 = vld [vmem:[%s3 + $0x58] sm:$0xf]
    %v1507 = vld [vmem:[%s3 + $0x5c] sm:$0xf]
    %v1508 = vld [vmem:[%s3 + $0x60] sm:$0xf]
    %v1509 = vld [vmem:[%s3 + $0x64] sm:$0xf]
    %v1510 = vld [vmem:[%s3 + $0x68] sm:$0xf]
    %v1511 = vld [vmem:[%s3 + $0x6c] sm:$0xf]
    %v1512 = vld [vmem:[%s3 + $0x70] sm:$0xf]
    %v1513 = vld [vmem:[%s3 + $0x74] sm:$0xf]
    %v1514 = vld [vmem:[%s3 + $0x78] sm:$0xf]
    %v1515 = vld [vmem:[%s3 + $0x7c] sm:$0xf]
    %v1516 = vld [vmem:[%s3 + $0x80] sm:$0xf]
    %v1517 = vld [vmem:[%s3 + $0x84] sm:$0xf]
    %v1518 = vld [vmem:[%s3 + $0x88] sm:$0xf]
    %v1519 = vld [vmem:[%s3 + $0x8c] sm:$0xf]
    %v1520 = vld [vmem:[%s3 + $0x90] sm:$0xf]
    %v1521 = vld [vmem:[%s3 + $0x94] sm:$0xf]
    %v1522 = vld [vmem:[%s3 + $0x98] sm:$0xf]
    %v1523 = vld [vmem:[%s3 + $0x9c] sm:$0xf]
    %v1524 = vld [vmem:[%s3 + $0xa0] sm:$0xf]
    %v1525 = vld [vmem:[%s3 + $0xa4] sm:$0xf]
    %v1526 = vld [vmem:[%s3 + $0xa8] sm:$0xf]
    %v1527 = vld [vmem:[%s3 + $0xac] sm:$0xf]
    %v1528 = vld [vmem:[%s3 + $0xb0] sm:$0xf]
    %v1529 = vld [vmem:[%s3 + $0xb4] sm:$0xf]
    %v1530 = vld [vmem:[%s3 + $0xb8] sm:$0xf]
    %v1531 = vld [vmem:[%s3 + $0xbc] sm:$0xf]
    %v1532 = vld [vmem:[%s3 + $0xc0] sm:$0xf]
    %v1533 = vld [vmem:[%s3 + $0xc4] sm:$0xf]
    %v1534 = vld [vmem:[%s3 + $0xc8] sm:$0xf]
    %v1535 = vld [vmem:[%s3 + $0xcc] sm:$0xf]
    %v1536 = vld [vmem:[%s3 + $0xd0] sm:$0xf]
    %v1537 = vld [vmem:[%s3 + $0xd4] sm:$0xf]
    %v1538 = vld [vmem:[%s3 + $0xd8] sm:$0xf]
    %v1539 = vld [vmem:[%s3 + $0xdc] sm:$0xf]
    %v1540 = vld [vmem:[%s3 + $0xe0] sm:$0xf]
    %v1541 = vld [vmem:[%s3 + $0xe4] sm:$0xf]
    %v1542 = vld [vmem:[%s3 + $0xe8] sm:$0xf]
    %v1543 = vld [vmem:[%s3 + $0xec] sm:$0xf]
    %v1544 = vld [vmem:[%s3 + $0xf0] sm:$0xf]
    %v1545 = vld [vmem:[%s3 + $0xf4] sm:$0xf]
    %v1546 = vld [vmem:[%s3 + $0xf8] sm:$0xf]
    %v1547 = vld [vmem:[%s3 + $0xfc] sm:$0xf]
    %v1548 = vld [vmem:[%s4] sm:$0x1]
    %v1550 = vlaneseq
    %v1551 = vshrl.u32 %v1550, 7
    %v1552 = vsub.s32 0, %v1551
    %v1553 = vrot.slane %v1548, %v1552
    %v1619 = vunpack.c.l.b16 %v1484
    %v1620 = vunpack.c.l.b16 %v1485
    %v1621 = vunpack.c.l.b16 %v1486
    %v1622 = vunpack.c.l.b16 %v1487
    %v1623 = vunpack.c.l.b16 %v1488
    %v1624 = vunpack.c.l.b16 %v1489
    %v1625 = vunpack.c.l.b16 %v1490
    %v1626 = vunpack.c.l.b16 %v1491
    %v1627 = vunpack.c.l.b16 %v1492
    %v1628 = vunpack.c.l.b16 %v1493
    %v1629 = vunpack.c.l.b16 %v1494
    %v1630 = vunpack.c.l.b16 %v1495
    %v1631 = vunpack.c.l.b16 %v1496
    %v1632 = vunpack.c.l.b16 %v1497
    %v1633 = vunpack.c.l.b16 %v1498
    %v1634 = vunpack.c.l.b16 %v1499
    %v1635 = vunpack.c.l.b16 %v1500
    %v1636 = vunpack.c.l.b16 %v1501
    %v1637 = vunpack.c.l.b16 %v1502
    %v1638 = vunpack.c.l.b16 %v1503
    %v1639 = vunpack.c.l.b16 %v1504
    %v1640 = vunpack.c.l.b16 %v1505
    %v1641 = vunpack.c.l.b16 %v1506
    %v1642 = vunpack.c.l.b16 %v1507
    %v1643 = vunpack.c.l.b16 %v1508
    %v1644 = vunpack.c.l.b16 %v1509
    %v1645 = vunpack.c.l.b16 %v1510
    %v1646 = vunpack.c.l.b16 %v1511
    %v1647 = vunpack.c.l.b16 %v1512
    %v1648 = vunpack.c.l.b16 %v1513
    %v1649 = vunpack.c.l.b16 %v1514
    %v1650 = vunpack.c.l.b16 %v1515
    %v1651 = vunpack.c.l.b16 %v1516
    %v1652 = vunpack.c.l.b16 %v1517
    %v1653 = vunpack.c.l.b16 %v1518
    %v1654 = vunpack.c.l.b16 %v1519
    %v1655 = vunpack.c.l.b16 %v1520
    %v1656 = vunpack.c.l.b16 %v1521
    %v1657 = vunpack.c.l.b16 %v1522
    %v1658 = vunpack.c.l.b16 %v1523
    %v1659 = vunpack.c.l.b16 %v1524
    %v1660 = vunpack.c.l.b16 %v1525
    %v1661 = vunpack.c.l.b16 %v1526
    %v1662 = vunpack.c.l.b16 %v1527
    %v1663 = vunpack.c.l.b16 %v1528
    %v1664 = vunpack.c.l.b16 %v1529
    %v1665 = vunpack.c.l.b16 %v1530
    %v1666 = vunpack.c.l.b16 %v1531
    %v1667 = vunpack.c.l.b16 %v1532
    %v1668 = vunpack.c.l.b16 %v1533
    %v1669 = vunpack.c.l.b16 %v1534
    %v1670 = vunpack.c.l.b16 %v1535
    %v1671 = vunpack.c.l.b16 %v1536
    %v1672 = vunpack.c.l.b16 %v1537
    %v1673 = vunpack.c.l.b16 %v1538
    %v1674 = vunpack.c.l.b16 %v1539
    %v1675 = vunpack.c.l.b16 %v1540
    %v1676 = vunpack.c.l.b16 %v1541
    %v1677 = vunpack.c.l.b16 %v1542
    %v1678 = vunpack.c.l.b16 %v1543
    %v1679 = vunpack.c.l.b16 %v1544
    %v1680 = vunpack.c.l.b16 %v1545
    %v1681 = vunpack.c.l.b16 %v1546
    %v1682 = vunpack.c.l.b16 %v1547
    %v1683 = vpack.c.b16 %v1620, %v1619
    %v1684 = vpack.c.b16 %v1622, %v1621
    %v1685 = vpack.c.b16 %v1624, %v1623
    %v1686 = vpack.c.b16 %v1626, %v1625
    %v1687 = vpack.c.b16 %v1628, %v1627
    %v1688 = vpack.c.b16 %v1630, %v1629
    %v1689 = vpack.c.b16 %v1632, %v1631
    %v1690 = vpack.c.b16 %v1634, %v1633
    %v1691 = vpack.c.b16 %v1636, %v1635
    %v1692 = vpack.c.b16 %v1638, %v1637
    %v1693 = vpack.c.b16 %v1640, %v1639
    %v1694 = vpack.c.b16 %v1642, %v1641
    %v1695 = vpack.c.b16 %v1644, %v1643
    %v1696 = vpack.c.b16 %v1646, %v1645
    %v1697 = vpack.c.b16 %v1648, %v1647
    %v1698 = vpack.c.b16 %v1650, %v1649
    %v1699 = vpack.c.b16 %v1652, %v1651
    %v1700 = vpack.c.b16 %v1654, %v1653
    %v1701 = vpack.c.b16 %v1656, %v1655
    %v1702 = vpack.c.b16 %v1658, %v1657
    %v1703 = vpack.c.b16 %v1660, %v1659
    %v1704 = vpack.c.b16 %v1662, %v1661
    %v1705 = vpack.c.b16 %v1664, %v1663
    %v1706 = vpack.c.b16 %v1666, %v1665
    %v1707 = vpack.c.b16 %v1668, %v1667
    %v1708 = vpack.c.b16 %v1670, %v1669
    %v1709 = vpack.c.b16 %v1672, %v1671
    %v1710 = vpack.c.b16 %v1674, %v1673
    %v1711 = vpack.c.b16 %v1676, %v1675
    %v1712 = vpack.c.b16 %v1678, %v1677
    %v1713 = vpack.c.b16 %v1680, %v1679
    %v1714 = vpack.c.b16 %v1682, %v1681
    %1747 = vmatprep.subr.bf16.mxu0 0
    %1748 = vmatpush1.bf16.msra.mxu0 %v1683
    %1749 = vmatprep.subr.bf16.mxu0 0
    %1750 = vmatpush1.bf16.msra.mxu0 %v1684
    %1751 = vmatprep.subr.bf16.mxu0 0
    %1752 = vmatpush1.bf16.msra.mxu0 %v1685
    %1753 = vmatprep.subr.bf16.mxu0 0
    %1754 = vmatpush1.bf16.msra.mxu0 %v1686
    %1755 = vmatprep.subr.bf16.mxu0 0
    %1756 = vmatpush1.bf16.msra.mxu0 %v1687
    %1757 = vmatprep.subr.bf16.mxu0 0
    %1758 = vmatpush1.bf16.msra.mxu0 %v1688
    %1759 = vmatprep.subr.bf16.mxu0 0
    %1760 = vmatpush1.bf16.msra.mxu0 %v1689
    %1761 = vmatprep.subr.bf16.mxu0 0
    %1762 = vmatpush1.bf16.msra.mxu0 %v1690
    %1763 = vmatprep.subr.bf16.mxu0 0
    %1764 = vmatpush1.bf16.msra.mxu0 %v1691
    %1765 = vmatprep.subr.bf16.mxu0 0
    %1766 = vmatpush1.bf16.msra.mxu0 %v1692
    %1767 = vmatprep.subr.bf16.mxu0 0
    %1768 = vmatpush1.bf16.msra.mxu0 %v1693
    %1769 = vmatprep.subr.bf16.mxu0 0
    %1770 = vmatpush1.bf16.msra.mxu0 %v1694
    %1771 = vmatprep.subr.bf16.mxu0 0
    %1772 = vmatpush1.bf16.msra.mxu0 %v1695
    %1773 = vmatprep.subr.bf16.mxu0 0
    %1774 = vmatpush1.bf16.msra.mxu0 %v1696
    %1775 = vmatprep.subr.bf16.mxu0 0
    %1776 = vmatpush1.bf16.msra.mxu0 %v1697
    %1777 = vmatprep.subr.bf16.mxu0 0
    %1778 = vmatpush1.bf16.msra.mxu0 %v1698
    %1779 = vmatprep.mubr.bf16.mxu0 %v1481
    %1780 = vmatmul.mubr.bf16.gmra.mrb[0].mxu0 %v1480
    %v1781 = vpop.f32.mrb[0].mxu0
    %v1782 = vadd.f32 %v1553, %v1781
    %v1783 = vpop.f32.mrb[0].mxu0
    %v1784 = vpop.f32.mrb[0].mxu0
    %v1785 = vadd.f32 %v1553, %v1784
    %v1786 = vpop.f32.mrb[0].mxu0
    %1787 = vdwg.mxu0
    %1788 = vmatprep.subr.bf16.mxu0 0
    %1789 = vmatpush1.bf16.msra.mxu0 %v1699
    %1790 = vmatprep.subr.bf16.mxu0 0
    %1791 = vmatpush1.bf16.msra.mxu0 %v1700
    %1792 = vmatprep.subr.bf16.mxu0 0
    %1793 = vmatpush1.bf16.msra.mxu0 %v1701
    %1794 = vmatprep.subr.bf16.mxu0 0
    %1795 = vmatpush1.bf16.msra.mxu0 %v1702
    %1796 = vmatprep.subr.bf16.mxu0 0
    %1797 = vmatpush1.bf16.msra.mxu0 %v1703
    %1798 = vmatprep.subr.bf16.mxu0 0
    %1799 = vmatpush1.bf16.msra.mxu0 %v1704
    %1800 = vmatprep.subr.bf16.mxu0 0
    %1801 = vmatpush1.bf16.msra.mxu0 %v1705
    %1802 = vmatprep.subr.bf16.mxu0 0
    %1803 = vmatpush1.bf16.msra.mxu0 %v1706
    %1804 = vmatprep.subr.bf16.mxu0 0
    %1805 = vmatpush1.bf16.msra.mxu0 %v1707
    %1806 = vmatprep.subr.bf16.mxu0 0
    %1807 = vmatpush1.bf16.msra.mxu0 %v1708
    %1808 = vmatprep.subr.bf16.mxu0 0
    %1809 = vmatpush1.bf16.msra.mxu0 %v1709
    %1810 = vmatprep.subr.bf16.mxu0 0
    %1811 = vmatpush1.bf16.msra.mxu0 %v1710
    %1812 = vmatprep.subr.bf16.mxu0 0
    %1813 = vmatpush1.bf16.msra.mxu0 %v1711
    %1814 = vmatprep.subr.bf16.mxu0 0
    %1815 = vmatpush1.bf16.msra.mxu0 %v1712
    %1816 = vmatprep.subr.bf16.mxu0 0
    %1817 = vmatpush1.bf16.msra.mxu0 %v1713
    %1818 = vmatprep.subr.bf16.mxu0 0
    %1819 = vmatpush1.bf16.msra.mxu0 %v1714
    %1820 = vmatprep.mubr.bf16.mxu0 %v1483
    %1821 = vmatmul.mubr.bf16.gmra.mrb[0].mxu0 %v1482
    %v1822 = vpop.f32.mrb[0].mxu0
    %v1823 = vadd.f32 %v1782, %v1822
    %v1824 = vpop.f32.mrb[0].mxu0
    %v1825 = vpop.f32.mrb[0].mxu0
    %v1826 = vadd.f32 %v1785, %v1825
    %v1827 = vpop.f32.mrb[0].mxu0
    %1828 = vdwg.mxu0
    %1829 = vst [vmem:[#allocation2] sm:$0xff] %v1823
    %1830 = vst [vmem:[#allocation2 + $0x8] sm:$0xff] %v1826
    // Predicated region
    $region22: #{propaganda_detection_head.1} parent=1 // pred_check
      _
    $region23: #{propaganda_detection_head.1} parent=1 // pred_check_branch
      %1832 = sbr.rel (0) target = $region25
    $region24: #{propaganda_detection_head.1} parent=1 // pred_region
      %s1834 = ssub.s32 256, 256
      %1835 = vsyncadd [#allocation3], %s1834
      %s1836 = sshll.u32 [#allocation2], 4
      %s1837 = int_to_ptr.vmem [resolvable:$true] %s1836
      %1842 = dma.vmem_to_hbm [thread:$0]  %s1837, 256, %s5, [#allocation3], 128, 128, 8
    $region25: #{propaganda_detection_head.1} parent=1 // pred_fallthru
      _
    // Predicated region
    $region26: #{propaganda_detection_head.1} parent=1 // pred_check
      _
    $region27: #{propaganda_detection_head.1} parent=1 // pred_check_branch
      %1844 = sbr.rel (0) target = $region29
    $region28: #{propaganda_detection_head.1} parent=1 // pred_region
      %1845 = dma.done [#allocation3], 256
    $region29: #{propaganda_detection_head.1} parent=1 // pred_fallthru
      _
    %1846 = vsyncpa [#allocation3], 1

</llo_original>
